<compile_context>
chip_gen: v6e
topology: v6e:2x2x1
jax: 0.10.0
libtpu: 0.0.40
codegen_flags: <defaults>
</compile_context>

<pallas_src>
import functools

import jax
import jax.numpy as jnp
from jax.experimental import pallas as pl
from jax.experimental.pallas import tpu as pltpu

LN_EPS = 1e-5                      # torch.nn.LayerNorm default
_SQRT_HALF = 0.7071067811865476
_SQRT_2_OVER_PI = 0.7978845608028654


def _round_up(v, m):
    return ((v + m - 1) // m) * m


def _cdiv(a, b):
    return -(-a // b)


def _gelu(x, approx):
    if approx:
        # tanh-approx GELU: transcendental lands on the EUP slot (v6e/v7x lever).
        return 0.5 * x * (1.0 + jnp.tanh(_SQRT_2_OVER_PI * (x + 0.044715 * x * x * x)))
    # torch.nn.GELU() default = exact erf-based GELU.
    return 0.5 * x * (1.0 + jax.lax.erf(x * _SQRT_HALF))


def _layernorm_masked(x, gamma, beta, d_true):
    """LayerNorm over the last (possibly zero-padded) axis.

    `d_true` is the real feature count.  Padded lanes of `x` are 0 and padded
    lanes of gamma/beta are 0, so padded output lanes stay exactly 0.
    """
    d_pad = x.shape[-1]
    inv_d = jnp.float32(1.0 / d_true)
    mu = jnp.sum(x, axis=-1, keepdims=True) * inv_d       # padded lanes add 0
    xc = x - mu
    if d_pad != d_true:
        lane = jax.lax.broadcasted_iota(jnp.int32, (1, d_pad), 1)
        xc_m = jnp.where(lane < d_true, xc, 0.0)
    else:
        xc_m = xc
    var = jnp.sum(xc_m * xc_m, axis=-1, keepdims=True) * inv_d
    return xc * jax.lax.rsqrt(var + LN_EPS) * gamma + beta


def _block_kernel(x_ref, g1_ref, b1_ref, w1_ref, bb1_ref,
                  g2_ref, b2_ref, w2_ref, bb2_ref, o_ref,
                  *, d1, d2, approx_gelu):
    x = x_ref[...].astype(jnp.float32)                    # (tm, mlp_pad) f32

    # --- norm1 + GELU (VPU/EUP, f32) ---
    h = _gelu(_layernorm_masked(x, g1_ref[...], b1_ref[...], d1), approx_gelu)

    # --- linear1: mlp -> hidden (bf16 operands on MXU, f32 accumulate) ---
    h = jnp.dot(h.astype(w1_ref.dtype), w1_ref[...],
                preferred_element_type=jnp.float32) + bb1_ref[...]

    # --- norm2 + GELU ---
    h = _gelu(_layernorm_masked(h, g2_ref[...], b2_ref[...], d2), approx_gelu)

    # --- linear2: hidden -> mlp ---
    # TODO(synk): for hidden_dim >= ~8192 on v7x (64 MiB VMEM), add a second
    # grid axis over hidden slabs (two-pass LN2 + f32 accumulator) so only a
    # weight slab is resident instead of the full w1/w2.
    y = jnp.dot(h.astype(w2_ref.dtype), w2_ref[...],
                preferred_element_type=jnp.float32) + bb2_ref[...]

    # --- residual add ---
    o_ref[...] = (y + x).astype(o_ref.dtype)


def prepare_params(params, *, lane_align=128, weight_dtype=jnp.bfloat16):
    """One-time weight prep (pad + cast), hoisted out of the per-call path.

    lane_align=128 is MXU-optimal on v5e; use 256 on v6e/v7x (2x256x256 MXU)
    when VMEM allows.  Weights are stored pre-transposed as (in, out).
    """
    mlp_dim, hidden_dim = params["w1"].shape
    mlp_pad = _round_up(mlp_dim, lane_align)
    hid_pad = _round_up(hidden_dim, lane_align)

    def row(v, d_pad):
        v = jnp.asarray(v, jnp.float32)
        return jnp.pad(v, (0, d_pad - v.shape[0])).reshape(1, d_pad)

    w1 = jnp.pad(jnp.asarray(params["w1"], jnp.float32),
                 ((0, mlp_pad - mlp_dim), (0, hid_pad - hidden_dim))
                 ).astype(weight_dtype)
    w2 = jnp.pad(jnp.asarray(params["w2"], jnp.float32),
                 ((0, hid_pad - hidden_dim), (0, mlp_pad - mlp_dim))
                 ).astype(weight_dtype)
    return {
        "mlp_dim": mlp_dim, "hidden_dim": hidden_dim,
        "g1": row(params["g1"], mlp_pad), "b1": row(params["b1"], mlp_pad),
        "w1": w1, "bb1": row(params["bb1"], hid_pad),
        "g2": row(params["g2"], hid_pad), "b2": row(params["b2"], hid_pad),
        "w2": w2, "bb2": row(params["bb2"], mlp_pad),
    }


@functools.partial(jax.jit, static_argnames=("mlp_dim", "hidden_dim", "tm_eff",
                                              "single_buffer", "approx_gelu"))
def _fused_call(x_in, g1, b1, w1, bb1, g2, b2, w2, bb2, *,
                mlp_dim, hidden_dim, tm_eff, single_buffer, approx_gelu):
    n, mlp_pad = x_in.shape
    hid_pad = w1.shape[1]
    grid_m = _cdiv(n, tm_eff)

    def param_spec(shape):
        if single_buffer:
            # Constant index_map -> nothing to prefetch; single buffer halves
            # resident weight/param VMEM.
            return pl.BlockSpec(shape, lambda i: (0, 0),
                                pipeline_mode=pl.Buffered(1))
        return pl.BlockSpec(shape, lambda i: (0, 0))

    # --- VMEM budget: resident weights + double-buffered x/out tiles + live
    # f32/bf16 intermediates, clamped to ~80% of this generation's capacity. ---
    wbytes = jnp.dtype(w1.dtype).itemsize
    xbytes = jnp.dtype(x_in.dtype).itemsize
    n_wbuf = 1 if single_buffer else 2
    weight_bytes = n_wbuf * wbytes * 2 * mlp_pad * hid_pad
    io_bytes = 2 * 2 * tm_eff * mlp_pad * xbytes                 # x + out, 2 bufs
    scratch_bytes = tm_eff * (3 * mlp_pad + 3 * hid_pad) * 4     # x/h/y f32 + bf16 copies
    try:
        vmem_cap = int(pltpu.get_tpu_info().vmem_capacity_bytes)
    except Exception:
        vmem_cap = 64 * 1024 * 1024
    vmem_limit = int(min(max((weight_bytes + io_bytes + scratch_bytes) * 3 // 2,
                             32 * 1024 * 1024),
                         vmem_cap * 4 // 5))

    cost = pl.CostEstimate(
        flops=4 * grid_m * tm_eff * mlp_pad * hid_pad,           # two matmuls
        transcendentals=2 * grid_m * tm_eff * (mlp_pad + hid_pad),
        bytes_accessed=(2 * n * mlp_pad * xbytes                 # x in + out
                        + 2 * mlp_pad * hid_pad * wbytes         # w1 + w2
                        + 4 * (mlp_pad + hid_pad) * 4),
    )

    kernel = functools.partial(_block_kernel, d1=mlp_dim, d2=hidden_dim,
                               approx_gelu=approx_gelu)

    return pl.pallas_call(
        kernel,
        out_shape=jax.ShapeDtypeStruct((n, mlp_pad), x_in.dtype),
        grid_spec=pltpu.PrefetchScalarGridSpec(
            num_scalar_prefetch=0,
            grid=(grid_m,),
            in_specs=[
                pl.BlockSpec((tm_eff, mlp_pad), lambda i: (i, 0)),  # x tile
                param_spec((1, mlp_pad)),                           # g1
                param_spec((1, mlp_pad)),                           # b1
                param_spec((mlp_pad, hid_pad)),                     # w1
                param_spec((1, hid_pad)),                           # bb1
                param_spec((1, hid_pad)),                           # g2
                param_spec((1, hid_pad)),                           # b2
                param_spec((hid_pad, mlp_pad)),                     # w2
                param_spec((1, mlp_pad)),                           # bb2
            ],
            out_specs=pl.BlockSpec((tm_eff, mlp_pad), lambda i: (i, 0)),
        ),
        compiler_params=pltpu.CompilerParams(
            dimension_semantics=("parallel",),
            vmem_limit_bytes=vmem_limit),
        cost_estimate=cost,
    )(x_in, g1, b1, w1, bb1, g2, b2, w2, bb2)


_SINGLE_BUFFER_OK = None


def _pick_tm(n, tm):
    """Balanced row tiles; >=2 grid steps when n > 8 so v7x's 2 TCs both work."""
    if n <= 8:
        return max(n, 1)
    num_tiles = max(_cdiv(n, tm), 2)
    return min(_round_up(_cdiv(n, num_tiles), 8), _round_up(n, 8))


def preact_residual_mlp_block(x, prepped, *, tm=256, approx_gelu=False):
    """x: (..., mlp_dim).  prepped: output of prepare_params (cached once)."""
    global _SINGLE_BUFFER_OK
    mlp_dim = prepped["mlp_dim"]
    mlp_pad = prepped["w1"].shape[0]
    orig_shape = x.shape

    x2d = x.reshape(-1, mlp_dim)
    n = x2d.shape[0]

    # Column zero-pad only when mlp_dim is not lane-aligned (needed for the
    # unmasked LN mean and MXU-aligned K).  When it is aligned, x flows through
    # in its original dtype with no pad / slice / cast passes over HBM.
    col_pad = mlp_pad - mlp_dim
    x_in = jnp.pad(x2d, ((0, 0), (0, col_pad))) if col_pad else x2d

    tm_eff = _pick_tm(n, tm)
    kwargs = dict(mlp_dim=mlp_dim, hidden_dim=prepped["hidden_dim"],
                  tm_eff=tm_eff, approx_gelu=approx_gelu)
    args = (x_in, prepped["g1"], prepped["b1"], prepped["w1"], prepped["bb1"],
            prepped["g2"], prepped["b2"], prepped["w2"], prepped["bb2"])

    if _SINGLE_BUFFER_OK is None:
        try:
            out = _fused_call(*args, single_buffer=True, **kwargs)
            _SINGLE_BUFFER_OK = True
        except Exception:
            _SINGLE_BUFFER_OK = False
            out = _fused_call(*args, single_buffer=False, **kwargs)
    else:
        out = _fused_call(*args, single_buffer=_SINGLE_BUFFER_OK, **kwargs)

    if col_pad:
        out = out[:, :mlp_dim]
    return out.reshape(orig_shape)


def init_params(key, hidden_dim, mlp_dim):
    """Deterministic init matching torch module parameter shapes.

    linear1: weight (hidden_dim, mlp_dim) -> stored transposed as w1 (mlp_dim, hidden_dim)
    linear2: weight (mlp_dim, hidden_dim) -> stored transposed as w2 (hidden_dim, mlp_dim)
    """
    k1, k2, k3, k4 = jax.random.split(key, 4)
    bound1 = 1.0 / jnp.sqrt(mlp_dim)
    bound2 = 1.0 / jnp.sqrt(hidden_dim)
    return {
        "g1": jnp.ones((mlp_dim,), jnp.float32),
        "b1": jnp.zeros((mlp_dim,), jnp.float32),
        "w1": jax.random.uniform(k1, (mlp_dim, hidden_dim), jnp.float32,
                                 -bound1, bound1),
        "bb1": jax.random.uniform(k2, (hidden_dim,), jnp.float32,
                                  -bound1, bound1),
        "g2": jnp.ones((hidden_dim,), jnp.float32),
        "b2": jnp.zeros((hidden_dim,), jnp.float32),
        "w2": jax.random.uniform(k3, (hidden_dim, mlp_dim), jnp.float32,
                                 -bound2, bound2),
        "bb2": jax.random.uniform(k4, (mlp_dim,), jnp.float32,
                                  -bound2, bound2),
    }


def _layernorm_ref(x, gamma, beta):
    mu = jnp.mean(x, axis=-1, keepdims=True)
    var = jnp.mean((x - mu) * (x - mu), axis=-1, keepdims=True)
    return (x - mu) * jax.lax.rsqrt(var + LN_EPS) * gamma + beta


def _reference(x, p):
    # Pure-JAX f32 reference of the same math (exact erf GELU).
    h = _gelu(_layernorm_ref(x, p["g1"], p["b1"]), approx=False)
    h = h @ p["w1"] + p["bb1"]
    h = _gelu(_layernorm_ref(h, p["g2"], p["b2"]), approx=False)
    y = h @ p["w2"] + p["bb2"]
    return y + x


if __name__ == "__main__":
    hidden_dim, mlp_dim = 64, 32
    batch, seq = 2, 8

    key = jax.random.PRNGKey(0)
    kx, kp = jax.random.split(key)
    x = jax.random.normal(kx, (batch, seq, mlp_dim), jnp.float32)
    params = init_params(kp, hidden_dim, mlp_dim)
    prepped = prepare_params(params)          # one-time pad + bf16 cast (hoisted)

    out = preact_residual_mlp_block(x, prepped)
    out = jax.block_until_ready(out)

    ref = _reference(x, params)
    assert out.shape == x.shape
    # bf16 matmul operands (f32 accumulation) -> slightly looser tolerance.
    assert jnp.allclose(out, ref, atol=5e-2, rtol=5e-2)

    print("KERNEL_OK")
</pallas_src>

<mosaic_0001>
module attributes {stable_mosaic.version = 11 : i64} {
  func.func @_block_kernel(%arg0: i32, %arg1: memref<8x128xf32, #tpu.memory_space<vmem>>, %arg2: memref<1x128xf32, #tpu.memory_space<vmem>>, %arg3: memref<1x128xf32, #tpu.memory_space<vmem>>, %arg4: memref<128x128xbf16, #tpu.memory_space<vmem>>, %arg5: memref<1x128xf32, #tpu.memory_space<vmem>>, %arg6: memref<1x128xf32, #tpu.memory_space<vmem>>, %arg7: memref<1x128xf32, #tpu.memory_space<vmem>>, %arg8: memref<128x128xbf16, #tpu.memory_space<vmem>>, %arg9: memref<1x128xf32, #tpu.memory_space<vmem>>, %arg10: memref<8x128xf32, #tpu.memory_space<vmem>>) attributes {dimension_semantics = [#tpu.dimension_semantics<parallel>], iteration_bounds = array<i64: 2>, scalar_prefetch = 0 : i64, scratch_operands = 0 : i64, tpu.core_type = #tpu.core_type<tc>, window_params = [{transform_indices = @transform_0, window_bounds = array<i64: 8, 128>}, {pipeline_mode = #tpu.pipeline_mode<synchronous>, transform_indices = @transform_1, window_bounds = array<i64: 1, 128>}, {pipeline_mode = #tpu.pipeline_mode<synchronous>, transform_indices = @transform_2, window_bounds = array<i64: 1, 128>}, {pipeline_mode = #tpu.pipeline_mode<synchronous>, transform_indices = @transform_3, window_bounds = array<i64: 128, 128>}, {pipeline_mode = #tpu.pipeline_mode<synchronous>, transform_indices = @transform_4, window_bounds = array<i64: 1, 128>}, {pipeline_mode = #tpu.pipeline_mode<synchronous>, transform_indices = @transform_5, window_bounds = array<i64: 1, 128>}, {pipeline_mode = #tpu.pipeline_mode<synchronous>, transform_indices = @transform_6, window_bounds = array<i64: 1, 128>}, {pipeline_mode = #tpu.pipeline_mode<synchronous>, transform_indices = @transform_7, window_bounds = array<i64: 128, 128>}, {pipeline_mode = #tpu.pipeline_mode<synchronous>, transform_indices = @transform_8, window_bounds = array<i64: 1, 128>}, {transform_indices = @transform_9, window_bounds = array<i64: 8, 128>}]} {
    %c0 = arith.constant 0 : index
    %c0_0 = arith.constant 0 : index
    %0 = vector.load %arg1[%c0, %c0_0] : memref<8x128xf32, #tpu.memory_space<vmem>>, vector<8x128xf32>
    %c0_1 = arith.constant 0 : index
    %c0_2 = arith.constant 0 : index
    %1 = vector.load %arg2[%c0_1, %c0_2] : memref<1x128xf32, #tpu.memory_space<vmem>>, vector<1x128xf32>
    %c0_3 = arith.constant 0 : index
    %c0_4 = arith.constant 0 : index
    %2 = vector.load %arg3[%c0_3, %c0_4] : memref<1x128xf32, #tpu.memory_space<vmem>>, vector<1x128xf32>
    %cst = arith.constant dense<0.000000e+00> : vector<8xf32>
    %3 = vector.multi_reduction <add>, %0, %cst [1] : vector<8x128xf32> to vector<8xf32>
    %4 = vector.shape_cast %3 : vector<8xf32> to vector<8x1xf32>
    %cst_5 = arith.constant 3.125000e-02 : f32
    %5 = vector.broadcast %cst_5 : f32 to vector<8x1xf32>
    %6 = arith.mulf %4, %5 : vector<8x1xf32>
    %7 = vector.broadcast %6 : vector<8x1xf32> to vector<8x128xf32>
    %8 = arith.subf %0, %7 : vector<8x128xf32>
    %9 = tpu.iota {dimensions = array<i32: 1>} : vector<1x128xi32>
    %c32_i32 = arith.constant 32 : i32
    %10 = vector.broadcast %c32_i32 : i32 to vector<1x128xi32>
    %11 = arith.cmpi slt, %9, %10 : vector<1x128xi32>
    %cst_6 = arith.constant 0.000000e+00 : f32
    %12 = vector.shape_cast %11 : vector<1x128xi1> to vector<1x128xi1>
    %13 = vector.broadcast %12 : vector<1x128xi1> to vector<8x128xi1>
    %14 = vector.broadcast %cst_6 : f32 to vector<8x128xf32>
    %15 = arith.select %13, %8, %14 : vector<8x128xi1>, vector<8x128xf32>
    %16 = arith.mulf %15, %15 : vector<8x128xf32>
    %cst_7 = arith.constant dense<0.000000e+00> : vector<8xf32>
    %17 = vector.multi_reduction <add>, %16, %cst_7 [1] : vector<8x128xf32> to vector<8xf32>
    %18 = vector.shape_cast %17 : vector<8xf32> to vector<8x1xf32>
    %cst_8 = arith.constant 3.125000e-02 : f32
    %19 = vector.broadcast %cst_8 : f32 to vector<8x1xf32>
    %20 = arith.mulf %18, %19 : vector<8x1xf32>
    %cst_9 = arith.constant 9.99999974E-6 : f32
    %21 = vector.broadcast %cst_9 : f32 to vector<8x1xf32>
    %22 = arith.addf %20, %21 : vector<8x1xf32>
    %23 = math.rsqrt %22 : vector<8x1xf32>
    %24 = vector.broadcast %23 : vector<8x1xf32> to vector<8x128xf32>
    %25 = arith.mulf %8, %24 : vector<8x128xf32>
    %26 = vector.broadcast %1 : vector<1x128xf32> to vector<8x128xf32>
    %27 = arith.mulf %25, %26 : vector<8x128xf32>
    %28 = vector.broadcast %2 : vector<1x128xf32> to vector<8x128xf32>
    %29 = arith.addf %27, %28 : vector<8x128xf32>
    %cst_10 = arith.constant 5.000000e-01 : f32
    %30 = vector.broadcast %cst_10 : f32 to vector<8x128xf32>
    %31 = arith.mulf %30, %29 : vector<8x128xf32>
    %cst_11 = arith.constant 0.707106769 : f32
    %32 = vector.broadcast %cst_11 : f32 to vector<8x128xf32>
    %33 = arith.mulf %29, %32 : vector<8x128xf32>
    %34 = math.erf %33 : vector<8x128xf32>
    %cst_12 = arith.constant 1.000000e+00 : f32
    %35 = vector.broadcast %cst_12 : f32 to vector<8x128xf32>
    %36 = arith.addf %35, %34 : vector<8x128xf32>
    %37 = arith.mulf %31, %36 : vector<8x128xf32>
    %38 = arith.truncf %37 : vector<8x128xf32> to vector<8x128xbf16>
    %c0_13 = arith.constant 0 : index
    %c0_14 = arith.constant 0 : index
    %39 = vector.load %arg4[%c0_13, %c0_14] : memref<128x128xbf16, #tpu.memory_space<vmem>>, vector<128x128xbf16>
    %cst_15 = arith.constant dense<0.000000e+00> : vector<8x128xf32>
    %40 = tpu.matmul %38, %39, %cst_15 {dimension_numbers = #tpu.dot_dimension_numbers<[1], [0], [0], [1], [0, 0, 1, 1], [], []>} : vector<8x128xbf16>, vector<128x128xbf16>, vector<8x128xf32> -> vector<8x128xf32>
    %c0_16 = arith.constant 0 : index
    %c0_17 = arith.constant 0 : index
    %41 = vector.load %arg5[%c0_16, %c0_17] : memref<1x128xf32, #tpu.memory_space<vmem>>, vector<1x128xf32>
    %42 = vector.broadcast %41 : vector<1x128xf32> to vector<8x128xf32>
    %43 = arith.addf %40, %42 : vector<8x128xf32>
    %c0_18 = arith.constant 0 : index
    %c0_19 = arith.constant 0 : index
    %44 = vector.load %arg6[%c0_18, %c0_19] : memref<1x128xf32, #tpu.memory_space<vmem>>, vector<1x128xf32>
    %c0_20 = arith.constant 0 : index
    %c0_21 = arith.constant 0 : index
    %45 = vector.load %arg7[%c0_20, %c0_21] : memref<1x128xf32, #tpu.memory_space<vmem>>, vector<1x128xf32>
    %cst_22 = arith.constant dense<0.000000e+00> : vector<8xf32>
    %46 = vector.multi_reduction <add>, %43, %cst_22 [1] : vector<8x128xf32> to vector<8xf32>
    %47 = vector.shape_cast %46 : vector<8xf32> to vector<8x1xf32>
    %cst_23 = arith.constant 1.562500e-02 : f32
    %48 = vector.broadcast %cst_23 : f32 to vector<8x1xf32>
    %49 = arith.mulf %47, %48 : vector<8x1xf32>
    %50 = vector.broadcast %49 : vector<8x1xf32> to vector<8x128xf32>
    %51 = arith.subf %43, %50 : vector<8x128xf32>
    %52 = tpu.iota {dimensions = array<i32: 1>} : vector<1x128xi32>
    %c64_i32 = arith.constant 64 : i32
    %53 = vector.broadcast %c64_i32 : i32 to vector<1x128xi32>
    %54 = arith.cmpi slt, %52, %53 : vector<1x128xi32>
    %cst_24 = arith.constant 0.000000e+00 : f32
    %55 = vector.shape_cast %54 : vector<1x128xi1> to vector<1x128xi1>
    %56 = vector.broadcast %55 : vector<1x128xi1> to vector<8x128xi1>
    %57 = vector.broadcast %cst_24 : f32 to vector<8x128xf32>
    %58 = arith.select %56, %51, %57 : vector<8x128xi1>, vector<8x128xf32>
    %59 = arith.mulf %58, %58 : vector<8x128xf32>
    %cst_25 = arith.constant dense<0.000000e+00> : vector<8xf32>
    %60 = vector.multi_reduction <add>, %59, %cst_25 [1] : vector<8x128xf32> to vector<8xf32>
    %61 = vector.shape_cast %60 : vector<8xf32> to vector<8x1xf32>
    %cst_26 = arith.constant 1.562500e-02 : f32
    %62 = vector.broadcast %cst_26 : f32 to vector<8x1xf32>
    %63 = arith.mulf %61, %62 : vector<8x1xf32>
    %cst_27 = arith.constant 9.99999974E-6 : f32
    %64 = vector.broadcast %cst_27 : f32 to vector<8x1xf32>
    %65 = arith.addf %63, %64 : vector<8x1xf32>
    %66 = math.rsqrt %65 : vector<8x1xf32>
    %67 = vector.broadcast %66 : vector<8x1xf32> to vector<8x128xf32>
    %68 = arith.mulf %51, %67 : vector<8x128xf32>
    %69 = vector.broadcast %44 : vector<1x128xf32> to vector<8x128xf32>
    %70 = arith.mulf %68, %69 : vector<8x128xf32>
    %71 = vector.broadcast %45 : vector<1x128xf32> to vector<8x128xf32>
    %72 = arith.addf %70, %71 : vector<8x128xf32>
    %cst_28 = arith.constant 5.000000e-01 : f32
    %73 = vector.broadcast %cst_28 : f32 to vector<8x128xf32>
    %74 = arith.mulf %73, %72 : vector<8x128xf32>
    %cst_29 = arith.constant 0.707106769 : f32
    %75 = vector.broadcast %cst_29 : f32 to vector<8x128xf32>
    %76 = arith.mulf %72, %75 : vector<8x128xf32>
    %77 = math.erf %76 : vector<8x128xf32>
    %cst_30 = arith.constant 1.000000e+00 : f32
    %78 = vector.broadcast %cst_30 : f32 to vector<8x128xf32>
    %79 = arith.addf %78, %77 : vector<8x128xf32>
    %80 = arith.mulf %74, %79 : vector<8x128xf32>
    %81 = arith.truncf %80 : vector<8x128xf32> to vector<8x128xbf16>
    %c0_31 = arith.constant 0 : index
    %c0_32 = arith.constant 0 : index
    %82 = vector.load %arg8[%c0_31, %c0_32] : memref<128x128xbf16, #tpu.memory_space<vmem>>, vector<128x128xbf16>
    %cst_33 = arith.constant dense<0.000000e+00> : vector<8x128xf32>
    %83 = tpu.matmul %81, %82, %cst_33 {dimension_numbers = #tpu.dot_dimension_numbers<[1], [0], [0], [1], [0, 0, 1, 1], [], []>} : vector<8x128xbf16>, vector<128x128xbf16>, vector<8x128xf32> -> vector<8x128xf32>
    %c0_34 = arith.constant 0 : index
    %c0_35 = arith.constant 0 : index
    %84 = vector.load %arg9[%c0_34, %c0_35] : memref<1x128xf32, #tpu.memory_space<vmem>>, vector<1x128xf32>
    %85 = vector.broadcast %84 : vector<1x128xf32> to vector<8x128xf32>
    %86 = arith.addf %83, %85 : vector<8x128xf32>
    %87 = arith.addf %86, %0 : vector<8x128xf32>
    %c0_36 = arith.constant 0 : index
    %c0_37 = arith.constant 0 : index
    %88 = vector.load %arg10[%c0_36, %c0_37] : memref<8x128xf32, #tpu.memory_space<vmem>>, vector<8x128xf32>
    tpu.vector_store %arg10[%c0_36, %c0_37], %87 {strides = array<i32>} : memref<8x128xf32, #tpu.memory_space<vmem>>, vector<8x128xf32>,
    return
  }
  func.func @transform_0(%arg0: i32) -> (i32, i32) {
    %c0_i32 = arith.constant 0 : i32
    %c0_i32_0 = arith.constant 0 : i32
    return %arg0, %c0_i32 : i32, i32
  }
  func.func @transform_1(%arg0: i32) -> (i32, i32) {
    %c0_i32 = arith.constant 0 : i32
    %c0_i32_0 = arith.constant 0 : i32
    %c0_i32_1 = arith.constant 0 : i32
    return %c0_i32, %c0_i32_0 : i32, i32
  }
  func.func @transform_2(%arg0: i32) -> (i32, i32) {
    %c0_i32 = arith.constant 0 : i32
    %c0_i32_0 = arith.constant 0 : i32
    %c0_i32_1 = arith.constant 0 : i32
    return %c0_i32, %c0_i32_0 : i32, i32
  }
  func.func @transform_3(%arg0: i32) -> (i32, i32) {
    %c0_i32 = arith.constant 0 : i32
    %c0_i32_0 = arith.constant 0 : i32
    %c0_i32_1 = arith.constant 0 : i32
    return %c0_i32, %c0_i32_0 : i32, i32
  }
  func.func @transform_4(%arg0: i32) -> (i32, i32) {
    %c0_i32 = arith.constant 0 : i32
    %c0_i32_0 = arith.constant 0 : i32
    %c0_i32_1 = arith.constant 0 : i32
    return %c0_i32, %c0_i32_0 : i32, i32
  }
  func.func @transform_5(%arg0: i32) -> (i32, i32) {
    %c0_i32 = arith.constant 0 : i32
    %c0_i32_0 = arith.constant 0 : i32
    %c0_i32_1 = arith.constant 0 : i32
    return %c0_i32, %c0_i32_0 : i32, i32
  }
  func.func @transform_6(%arg0: i32) -> (i32, i32) {
    %c0_i32 = arith.constant 0 : i32
    %c0_i32_0 = arith.constant 0 : i32
    %c0_i32_1 = arith.constant 0 : i32
    return %c0_i32, %c0_i32_0 : i32, i32
  }
  func.func @transform_7(%arg0: i32) -> (i32, i32) {
    %c0_i32 = arith.constant 0 : i32
    %c0_i32_0 = arith.constant 0 : i32
    %c0_i32_1 = arith.constant 0 : i32
    return %c0_i32, %c0_i32_0 : i32, i32
  }
  func.func @transform_8(%arg0: i32) -> (i32, i32) {
    %c0_i32 = arith.constant 0 : i32
    %c0_i32_0 = arith.constant 0 : i32
    %c0_i32_1 = arith.constant 0 : i32
    return %c0_i32, %c0_i32_0 : i32, i32
  }
  func.func @transform_9(%arg0: i32) -> (i32, i32) {
    %c0_i32 = arith.constant 0 : i32
    %c0_i32_0 = arith.constant 0 : i32
    return %arg0, %c0_i32 : i32, i32
  }
}

module attributes {stable_mosaic.version = 11 : i64} {
  func.func @_block_kernel(%arg0: i32, %arg1: memref<8x128xf32, #tpu.memory_space<vmem>>, %arg2: memref<1x128xf32, #tpu.memory_space<vmem>>, %arg3: memref<1x128xf32, #tpu.memory_space<vmem>>, %arg4: memref<128x128xbf16, #tpu.memory_space<vmem>>, %arg5: memref<1x128xf32, #tpu.memory_space<vmem>>, %arg6: memref<1x128xf32, #tpu.memory_space<vmem>>, %arg7: memref<1x128xf32, #tpu.memory_space<vmem>>, %arg8: memref<128x128xbf16, #tpu.memory_space<vmem>>, %arg9: memref<1x128xf32, #tpu.memory_space<vmem>>, %arg10: memref<8x128xf32, #tpu.memory_space<vmem>>) attributes {dimension_semantics = [#tpu.dimension_semantics<parallel>], iteration_bounds = array<i64: 2>, scalar_prefetch = 0 : i64, scratch_operands = 0 : i64, tpu.core_type = #tpu.core_type<tc>, window_params = [{transform_indices = @transform_0, window_bounds = array<i64: 8, 128>}, {pipeline_mode = #tpu.pipeline_mode<synchronous>, transform_indices = @transform_1, window_bounds = array<i64: 1, 128>}, {pipeline_mode = #tpu.pipeline_mode<synchronous>, transform_indices = @transform_2, window_bounds = array<i64: 1, 128>}, {pipeline_mode = #tpu.pipeline_mode<synchronous>, transform_indices = @transform_3, window_bounds = array<i64: 128, 128>}, {pipeline_mode = #tpu.pipeline_mode<synchronous>, transform_indices = @transform_4, window_bounds = array<i64: 1, 128>}, {pipeline_mode = #tpu.pipeline_mode<synchronous>, transform_indices = @transform_5, window_bounds = array<i64: 1, 128>}, {pipeline_mode = #tpu.pipeline_mode<synchronous>, transform_indices = @transform_6, window_bounds = array<i64: 1, 128>}, {pipeline_mode = #tpu.pipeline_mode<synchronous>, transform_indices = @transform_7, window_bounds = array<i64: 128, 128>}, {pipeline_mode = #tpu.pipeline_mode<synchronous>, transform_indices = @transform_8, window_bounds = array<i64: 1, 128>}, {transform_indices = @transform_9, window_bounds = array<i64: 8, 128>}]} {
    %c0 = arith.constant 0 : index
    %c0_0 = arith.constant 0 : index
    %0 = vector.load %arg1[%c0, %c0_0] : memref<8x128xf32, #tpu.memory_space<vmem>>, vector<8x128xf32>
    %c0_1 = arith.constant 0 : index
    %c0_2 = arith.constant 0 : index
    %1 = vector.load %arg2[%c0_1, %c0_2] : memref<1x128xf32, #tpu.memory_space<vmem>>, vector<1x128xf32>
    %c0_3 = arith.constant 0 : index
    %c0_4 = arith.constant 0 : index
    %2 = vector.load %arg3[%c0_3, %c0_4] : memref<1x128xf32, #tpu.memory_space<vmem>>, vector<1x128xf32>
    %cst = arith.constant dense<0.000000e+00> : vector<8xf32>
    %3 = vector.multi_reduction <add>, %0, %cst [1] : vector<8x128xf32> to vector<8xf32>
    %4 = vector.shape_cast %3 : vector<8xf32> to vector<8x1xf32>
    %cst_5 = arith.constant 3.125000e-02 : f32
    %5 = vector.broadcast %cst_5 : f32 to vector<8x1xf32>
    %6 = arith.mulf %4, %5 : vector<8x1xf32>
    %7 = vector.broadcast %6 : vector<8x1xf32> to vector<8x128xf32>
    %8 = arith.subf %0, %7 : vector<8x128xf32>
    %9 = tpu.iota {dimensions = array<i32: 1>} : vector<1x128xi32>
    %c32_i32 = arith.constant 32 : i32
    %10 = vector.broadcast %c32_i32 : i32 to vector<1x128xi32>
    %11 = arith.cmpi slt, %9, %10 : vector<1x128xi32>
    %cst_6 = arith.constant 0.000000e+00 : f32
    %12 = vector.shape_cast %11 : vector<1x128xi1> to vector<1x128xi1>
    %13 = vector.broadcast %12 : vector<1x128xi1> to vector<8x128xi1>
    %14 = vector.broadcast %cst_6 : f32 to vector<8x128xf32>
    %15 = arith.select %13, %8, %14 : vector<8x128xi1>, vector<8x128xf32>
    %16 = arith.mulf %15, %15 : vector<8x128xf32>
    %cst_7 = arith.constant dense<0.000000e+00> : vector<8xf32>
    %17 = vector.multi_reduction <add>, %16, %cst_7 [1] : vector<8x128xf32> to vector<8xf32>
    %18 = vector.shape_cast %17 : vector<8xf32> to vector<8x1xf32>
    %cst_8 = arith.constant 3.125000e-02 : f32
    %19 = vector.broadcast %cst_8 : f32 to vector<8x1xf32>
    %20 = arith.mulf %18, %19 : vector<8x1xf32>
    %cst_9 = arith.constant 9.99999974E-6 : f32
    %21 = vector.broadcast %cst_9 : f32 to vector<8x1xf32>
    %22 = arith.addf %20, %21 : vector<8x1xf32>
    %23 = math.rsqrt %22 : vector<8x1xf32>
    %24 = vector.broadcast %23 : vector<8x1xf32> to vector<8x128xf32>
    %25 = arith.mulf %8, %24 : vector<8x128xf32>
    %26 = vector.broadcast %1 : vector<1x128xf32> to vector<8x128xf32>
    %27 = arith.mulf %25, %26 : vector<8x128xf32>
    %28 = vector.broadcast %2 : vector<1x128xf32> to vector<8x128xf32>
    %29 = arith.addf %27, %28 : vector<8x128xf32>
    %cst_10 = arith.constant 5.000000e-01 : f32
    %30 = vector.broadcast %cst_10 : f32 to vector<8x128xf32>
    %31 = arith.mulf %30, %29 : vector<8x128xf32>
    %cst_11 = arith.constant 0.707106769 : f32
    %32 = vector.broadcast %cst_11 : f32 to vector<8x128xf32>
    %33 = arith.mulf %29, %32 : vector<8x128xf32>
    %34 = math.erf %33 : vector<8x128xf32>
    %cst_12 = arith.constant 1.000000e+00 : f32
    %35 = vector.broadcast %cst_12 : f32 to vector<8x128xf32>
    %36 = arith.addf %35, %34 : vector<8x128xf32>
    %37 = arith.mulf %31, %36 : vector<8x128xf32>
    %38 = arith.truncf %37 : vector<8x128xf32> to vector<8x128xbf16>
    %c0_13 = arith.constant 0 : index
    %c0_14 = arith.constant 0 : index
    %39 = vector.load %arg4[%c0_13, %c0_14] : memref<128x128xbf16, #tpu.memory_space<vmem>>, vector<128x128xbf16>
    %cst_15 = arith.constant dense<0.000000e+00> : vector<8x128xf32>
    %40 = tpu.matmul %38, %39, %cst_15 {dimension_numbers = #tpu.dot_dimension_numbers<[1], [0], [0], [1], [0, 0, 1, 1], [], []>} : vector<8x128xbf16>, vector<128x128xbf16>, vector<8x128xf32> -> vector<8x128xf32>
    %c0_16 = arith.constant 0 : index
    %c0_17 = arith.constant 0 : index
    %41 = vector.load %arg5[%c0_16, %c0_17] : memref<1x128xf32, #tpu.memory_space<vmem>>, vector<1x128xf32>
    %42 = vector.broadcast %41 : vector<1x128xf32> to vector<8x128xf32>
    %43 = arith.addf %40, %42 : vector<8x128xf32>
    %c0_18 = arith.constant 0 : index
    %c0_19 = arith.constant 0 : index
    %44 = vector.load %arg6[%c0_18, %c0_19] : memref<1x128xf32, #tpu.memory_space<vmem>>, vector<1x128xf32>
    %c0_20 = arith.constant 0 : index
    %c0_21 = arith.constant 0 : index
    %45 = vector.load %arg7[%c0_20, %c0_21] : memref<1x128xf32, #tpu.memory_space<vmem>>, vector<1x128xf32>
    %cst_22 = arith.constant dense<0.000000e+00> : vector<8xf32>
    %46 = vector.multi_reduction <add>, %43, %cst_22 [1] : vector<8x128xf32> to vector<8xf32>
    %47 = vector.shape_cast %46 : vector<8xf32> to vector<8x1xf32>
    %cst_23 = arith.constant 1.562500e-02 : f32
    %48 = vector.broadcast %cst_23 : f32 to vector<8x1xf32>
    %49 = arith.mulf %47, %48 : vector<8x1xf32>
    %50 = vector.broadcast %49 : vector<8x1xf32> to vector<8x128xf32>
    %51 = arith.subf %43, %50 : vector<8x128xf32>
    %52 = tpu.iota {dimensions = array<i32: 1>} : vector<1x128xi32>
    %c64_i32 = arith.constant 64 : i32
    %53 = vector.broadcast %c64_i32 : i32 to vector<1x128xi32>
    %54 = arith.cmpi slt, %52, %53 : vector<1x128xi32>
    %cst_24 = arith.constant 0.000000e+00 : f32
    %55 = vector.shape_cast %54 : vector<1x128xi1> to vector<1x128xi1>
    %56 = vector.broadcast %55 : vector<1x128xi1> to vector<8x128xi1>
    %57 = vector.broadcast %cst_24 : f32 to vector<8x128xf32>
    %58 = arith.select %56, %51, %57 : vector<8x128xi1>, vector<8x128xf32>
    %59 = arith.mulf %58, %58 : vector<8x128xf32>
    %cst_25 = arith.constant dense<0.000000e+00> : vector<8xf32>
    %60 = vector.multi_reduction <add>, %59, %cst_25 [1] : vector<8x128xf32> to vector<8xf32>
    %61 = vector.shape_cast %60 : vector<8xf32> to vector<8x1xf32>
    %cst_26 = arith.constant 1.562500e-02 : f32
    %62 = vector.broadcast %cst_26 : f32 to vector<8x1xf32>
    %63 = arith.mulf %61, %62 : vector<8x1xf32>
    %cst_27 = arith.constant 9.99999974E-6 : f32
    %64 = vector.broadcast %cst_27 : f32 to vector<8x1xf32>
    %65 = arith.addf %63, %64 : vector<8x1xf32>
    %66 = math.rsqrt %65 : vector<8x1xf32>
    %67 = vector.broadcast %66 : vector<8x1xf32> to vector<8x128xf32>
    %68 = arith.mulf %51, %67 : vector<8x128xf32>
    %69 = vector.broadcast %44 : vector<1x128xf32> to vector<8x128xf32>
    %70 = arith.mulf %68, %69 : vector<8x128xf32>
    %71 = vector.broadcast %45 : vector<1x128xf32> to vector<8x128xf32>
    %72 = arith.addf %70, %71 : vector<8x128xf32>
    %cst_28 = arith.constant 5.000000e-01 : f32
    %73 = vector.broadcast %cst_28 : f32 to vector<8x128xf32>
    %74 = arith.mulf %73, %72 : vector<8x128xf32>
    %cst_29 = arith.constant 0.707106769 : f32
    %75 = vector.broadcast %cst_29 : f32 to vector<8x128xf32>
    %76 = arith.mulf %72, %75 : vector<8x128xf32>
    %77 = math.erf %76 : vector<8x128xf32>
    %cst_30 = arith.constant 1.000000e+00 : f32
    %78 = vector.broadcast %cst_30 : f32 to vector<8x128xf32>
    %79 = arith.addf %78, %77 : vector<8x128xf32>
    %80 = arith.mulf %74, %79 : vector<8x128xf32>
    %81 = arith.truncf %80 : vector<8x128xf32> to vector<8x128xbf16>
    %c0_31 = arith.constant 0 : index
    %c0_32 = arith.constant 0 : index
    %82 = vector.load %arg8[%c0_31, %c0_32] : memref<128x128xbf16, #tpu.memory_space<vmem>>, vector<128x128xbf16>
    %cst_33 = arith.constant dense<0.000000e+00> : vector<8x128xf32>
    %83 = tpu.matmul %81, %82, %cst_33 {dimension_numbers = #tpu.dot_dimension_numbers<[1], [0], [0], [1], [0, 0, 1, 1], [], []>} : vector<8x128xbf16>, vector<128x128xbf16>, vector<8x128xf32> -> vector<8x128xf32>
    %c0_34 = arith.constant 0 : index
    %c0_35 = arith.constant 0 : index
    %84 = vector.load %arg9[%c0_34, %c0_35] : memref<1x128xf32, #tpu.memory_space<vmem>>, vector<1x128xf32>
    %85 = vector.broadcast %84 : vector<1x128xf32> to vector<8x128xf32>
    %86 = arith.addf %83, %85 : vector<8x128xf32>
    %87 = arith.addf %86, %0 : vector<8x128xf32>
    %c0_36 = arith.constant 0 : index
    %c0_37 = arith.constant 0 : index
    %88 = vector.load %arg10[%c0_36, %c0_37] : memref<8x128xf32, #tpu.memory_space<vmem>>, vector<8x128xf32>
    tpu.vector_store %arg10[%c0_36, %c0_37], %87 {strides = array<i32>} : memref<8x128xf32, #tpu.memory_space<vmem>>, vector<8x128xf32>,
    return
  }
  func.func @transform_0(%arg0: i32) -> (i32, i32) {
    %c0_i32 = arith.constant 0 : i32
    %c0_i32_0 = arith.constant 0 : i32
    return %arg0, %c0_i32 : i32, i32
  }
  func.func @transform_1(%arg0: i32) -> (i32, i32) {
    %c0_i32 = arith.constant 0 : i32
    %c0_i32_0 = arith.constant 0 : i32
    %c0_i32_1 = arith.constant 0 : i32
    return %c0_i32, %c0_i32_0 : i32, i32
  }
  func.func @transform_2(%arg0: i32) -> (i32, i32) {
    %c0_i32 = arith.constant 0 : i32
    %c0_i32_0 = arith.constant 0 : i32
    %c0_i32_1 = arith.constant 0 : i32
    return %c0_i32, %c0_i32_0 : i32, i32
  }
  func.func @transform_3(%arg0: i32) -> (i32, i32) {
    %c0_i32 = arith.constant 0 : i32
    %c0_i32_0 = arith.constant 0 : i32
    %c0_i32_1 = arith.constant 0 : i32
    return %c0_i32, %c0_i32_0 : i32, i32
  }
  func.func @transform_4(%arg0: i32) -> (i32, i32) {
    %c0_i32 = arith.constant 0 : i32
    %c0_i32_0 = arith.constant 0 : i32
    %c0_i32_1 = arith.constant 0 : i32
    return %c0_i32, %c0_i32_0 : i32, i32
  }
  func.func @transform_5(%arg0: i32) -> (i32, i32) {
    %c0_i32 = arith.constant 0 : i32
    %c0_i32_0 = arith.constant 0 : i32
    %c0_i32_1 = arith.constant 0 : i32
    return %c0_i32, %c0_i32_0 : i32, i32
  }
  func.func @transform_6(%arg0: i32) -> (i32, i32) {
    %c0_i32 = arith.constant 0 : i32
    %c0_i32_0 = arith.constant 0 : i32
    %c0_i32_1 = arith.constant 0 : i32
    return %c0_i32, %c0_i32_0 : i32, i32
  }
  func.func @transform_7(%arg0: i32) -> (i32, i32) {
    %c0_i32 = arith.constant 0 : i32
    %c0_i32_0 = arith.constant 0 : i32
    %c0_i32_1 = arith.constant 0 : i32
    return %c0_i32, %c0_i32_0 : i32, i32
  }
  func.func @transform_8(%arg0: i32) -> (i32, i32) {
    %c0_i32 = arith.constant 0 : i32
    %c0_i32_0 = arith.constant 0 : i32
    %c0_i32_1 = arith.constant 0 : i32
    return %c0_i32, %c0_i32_0 : i32, i32
  }
  func.func @transform_9(%arg0: i32) -> (i32, i32) {
    %c0_i32 = arith.constant 0 : i32
    %c0_i32_0 = arith.constant 0 : i32
    return %arg0, %c0_i32 : i32, i32
  }
}

</mosaic_0001>

<llo_original>
// kernel: _fused_call.1
$region0: #{_fused_call.1}
  #allocation0 [shape = 'u32[]', space=smem, size = 0x4, offset = 0x4, fixed_abs, tag = 'smem constant byte address 0x4 - core index']
  #allocation1 [shape = 'u32[144,128]{1,0:T(1,128)}', space=vmem, size = 0x12000, scoped, tag = 'internal scratch']
  %s0 = inlined_call_operand.hbm [shape: f32[16,128], index: 0, kind: input, shape index: {}]
  %s1 = inlined_call_operand.vmem [shape: f32[1,128], index: 1, kind: input, shape index: {}]
  %s2 = inlined_call_operand.vmem [shape: f32[1,128], index: 2, kind: input, shape index: {}]
  %s3 = inlined_call_operand.hbm [shape: bf16[128,128], index: 3, kind: input, shape index: {}]
  %s4 = inlined_call_operand.vmem [shape: f32[1,128], index: 4, kind: input, shape index: {}]
  %s5 = inlined_call_operand.vmem [shape: f32[1,128], index: 5, kind: input, shape index: {}]
  %s6 = inlined_call_operand.vmem [shape: f32[1,128], index: 6, kind: input, shape index: {}]
  %s7 = inlined_call_operand.hbm [shape: bf16[128,128], index: 7, kind: input, shape index: {}]
  %s8 = inlined_call_operand.vmem [shape: f32[1,128], index: 8, kind: input, shape index: {}]
  %s9 = inlined_call_operand.hbm [shape: f32[16,128], index: 9, kind: output, shape index: {}]
  %s10 = sld [smem:[#allocation0]]
  $region81: #{_fused_call.1} parent=0
    _
  %s12 = ssub.s32 1, %s10
  %s13 = scalar_select 0, %s12, %s10
  $region1: #{_fused_call.1} parent=0
    #allocation2 [shape = 'u8[8192]{0}', space=vmem, size = 0x2000, scoped, tag = 'input window, operand 0']
    #allocation3 [shape = 's32[2]{0}', space=sflag, size = 0x8, scoped, tag = 'scoped memory for _fused_call.1']
    #allocation4 [shape = 's32[2]{0}', space=sflag, size = 0x8, scoped, tag = 'scoped memory for _fused_call.1']
    #allocation5 [shape = 'u8[32768]{0}', space=vmem, size = 0x8000, scoped, tag = 'input window, operand 3, single buffered']
    #allocation6 [shape = 's32[1]{0}', space=sflag, size = 0x4, scoped, tag = 'scoped memory for _fused_call.1']
    #allocation7 [shape = 'u8[32768]{0}', space=vmem, size = 0x8000, scoped, tag = 'input window, operand 7, single buffered']
    #allocation8 [shape = 'u8[8192]{0}', space=vmem, size = 0x2000, scoped, tag = 'output window, operand 0']
    %14 = vsyncpa [#allocation3], 0
    %s15 = scalar_lea.sflag [#allocation3], 1
    %16 = vsyncpa %s15, 0
    %17 = vsyncpa [#allocation6], 0
    %18 = vsyncpa [#allocation4], 0
    %s19 = scalar_lea.sflag [#allocation4], 1
    %20 = vsyncpa %s19, 0
    loop: start=0, step=1, limit=4
    $region2: #{_fused_call.1} parent=1 // loop_pre_header
      _
    $region3: #{_fused_call.1} parent=1 // loop_header
      %s22 = sphi 0, %s26
      %p23 = scmp.ge.s32.totalorder %s22, 4
      %s32 = sphi 0, %s34
      %s35 = sphi 0, %s32
      %s36 = sphi 0, %s35
      %s52 = sphi 0, %s36
      %s56 = sphi 0, %s56
      %s58 = sphi 0, %s56
      %s59 = sphi 0, %s58
      %s73 = sphi 0, %s59
      %s77 = sphi 0, %s77
      %s79 = sphi 0, %s77
      %s80 = sphi 0, %s79
      %s94 = sphi 0, %s80
      %s98 = sphi 0, %s98
      %s100 = sphi 0, %s98
      %s101 = sphi 0, %s100
      %s115 = sphi 0, %s101
      %s119 = sphi 0, %s119
      %s121 = sphi 0, %s119
      %s122 = sphi 0, %s121
      %s136 = sphi 0, %s122
      %s140 = sphi 0, %s140
      %s142 = sphi 0, %s140
      %s143 = sphi 0, %s142
      %s157 = sphi 0, %s143
      %s161 = sphi 0, %s161
      %s163 = sphi 0, %s161
      %s164 = sphi 0, %s163
      %s178 = sphi 0, %s164
      %s182 = sphi 0, %s182
      %s184 = sphi 0, %s182
      %s185 = sphi 0, %s184
      %s199 = sphi 0, %s185
      %s203 = sphi 0, %s203
      %s205 = sphi 0, %s203
      %s206 = sphi 0, %s205
      %s220 = sphi 0, %s206
      %s226 = sphi 0, %s228
      %s229 = sphi 0, %s226
      %s230 = sphi 0, %s229
      %s246 = sphi 0, %s230
    $region4: #{_fused_call.1} parent=1 // loop_header_branch
      %25 = sbr.rel (%p23) target = $region8
    $region5: #{_fused_call.1} parent=1 // loop_body
      %s27 = ssub.s32 %s22, 1
      %s28 = ssub.s32 %s22, 2
      %s29 = sadd.s32 %s22, 1
      %s30 = ssub.s32 %s22, %s29
      %p31 = scmp.eq.s32.totalorder %s30, 0
      %s33 = sadd.s32 %s32, 1
      %s34 = scalar_select %p31, %s32, %s33
      %p37 = pneg %p31
      %p38 = scmp.eq.s32.totalorder %s22, 1
      %p39 = por %p37, %p38
      %p40 = scmp.ne.s32.totalorder %s32, %s35
      %p41 = scmp.eq.s32.totalorder %s22, 0
      %p42 = por %p40, %p41
      %p43 = scmp.ne.s32.totalorder %s32, %s35
      %p44 = scmp.eq.s32.totalorder %s27, 1
      %p45 = por %p43, %p44
      %p46 = scmp.ne.s32.totalorder %s35, %s36
      %p47 = scmp.eq.s32.totalorder %s27, 0
      %p48 = por %p46, %p47
      %p49 = scmp.ne.s32.totalorder %s35, %s36
      %p50 = scmp.eq.s32.totalorder %s28, 1
      %p51 = por %p49, %p50
      %p53 = scmp.ne.s32.totalorder %s36, %s52
      %p54 = scmp.eq.s32.totalorder %s28, 0
      %p55 = por %p53, %p54
      %s57 = sadd.s32 %s56, 1
      %p60 = scmp.eq.s32.totalorder %s22, 1
      %p61 = scmp.ne.s32.totalorder %s56, %s58
      %p62 = scmp.eq.s32.totalorder %s22, 0
      %p63 = por %p61, %p62
      %p64 = scmp.ne.s32.totalorder %s56, %s58
      %p65 = scmp.eq.s32.totalorder %s27, 1
      %p66 = por %p64, %p65
      %p67 = scmp.ne.s32.totalorder %s58, %s59
      %p68 = scmp.eq.s32.totalorder %s27, 0
      %p69 = por %p67, %p68
      %p70 = scmp.ne.s32.totalorder %s58, %s59
      %p71 = scmp.eq.s32.totalorder %s28, 1
      %p72 = por %p70, %p71
      %p74 = scmp.ne.s32.totalorder %s59, %s73
      %p75 = scmp.eq.s32.totalorder %s28, 0
      %p76 = por %p74, %p75
      %s78 = sadd.s32 %s77, 1
      %p81 = scmp.eq.s32.totalorder %s22, 1
      %p82 = scmp.ne.s32.totalorder %s77, %s79
      %p83 = scmp.eq.s32.totalorder %s22, 0
      %p84 = por %p82, %p83
      %p85 = scmp.ne.s32.totalorder %s77, %s79
      %p86 = scmp.eq.s32.totalorder %s27, 1
      %p87 = por %p85, %p86
      %p88 = scmp.ne.s32.totalorder %s79, %s80
      %p89 = scmp.eq.s32.totalorder %s27, 0
      %p90 = por %p88, %p89
      %p91 = scmp.ne.s32.totalorder %s79, %s80
      %p92 = scmp.eq.s32.totalorder %s28, 1
      %p93 = por %p91, %p92
      %p95 = scmp.ne.s32.totalorder %s80, %s94
      %p96 = scmp.eq.s32.totalorder %s28, 0
      %p97 = por %p95, %p96
      %s99 = sadd.s32 %s98, 1
      %p102 = scmp.eq.s32.totalorder %s22, 1
      %p103 = scmp.ne.s32.totalorder %s98, %s100
      %p104 = scmp.eq.s32.totalorder %s22, 0
      %p105 = por %p103, %p104
      %p106 = scmp.ne.s32.totalorder %s98, %s100
      %p107 = scmp.eq.s32.totalorder %s27, 1
      %p108 = por %p106, %p107
      %p109 = scmp.ne.s32.totalorder %s100, %s101
      %p110 = scmp.eq.s32.totalorder %s27, 0
      %p111 = por %p109, %p110
      %p112 = scmp.ne.s32.totalorder %s100, %s101
      %p113 = scmp.eq.s32.totalorder %s28, 1
      %p114 = por %p112, %p113
      %p116 = scmp.ne.s32.totalorder %s101, %s115
      %p117 = scmp.eq.s32.totalorder %s28, 0
      %p118 = por %p116, %p117
      %s120 = sadd.s32 %s119, 1
      %p123 = scmp.eq.s32.totalorder %s22, 1
      %p124 = scmp.ne.s32.totalorder %s119, %s121
      %p125 = scmp.eq.s32.totalorder %s22, 0
      %p126 = por %p124, %p125
      %p127 = scmp.ne.s32.totalorder %s119, %s121
      %p128 = scmp.eq.s32.totalorder %s27, 1
      %p129 = por %p127, %p128
      %p130 = scmp.ne.s32.totalorder %s121, %s122
      %p131 = scmp.eq.s32.totalorder %s27, 0
      %p132 = por %p130, %p131
      %p133 = scmp.ne.s32.totalorder %s121, %s122
      %p134 = scmp.eq.s32.totalorder %s28, 1
      %p135 = por %p133, %p134
      %p137 = scmp.ne.s32.totalorder %s122, %s136
      %p138 = scmp.eq.s32.totalorder %s28, 0
      %p139 = por %p137, %p138
      %s141 = sadd.s32 %s140, 1
      %p144 = scmp.eq.s32.totalorder %s22, 1
      %p145 = scmp.ne.s32.totalorder %s140, %s142
      %p146 = scmp.eq.s32.totalorder %s22, 0
      %p147 = por %p145, %p146
      %p148 = scmp.ne.s32.totalorder %s140, %s142
      %p149 = scmp.eq.s32.totalorder %s27, 1
      %p150 = por %p148, %p149
      %p151 = scmp.ne.s32.totalorder %s142, %s143
      %p152 = scmp.eq.s32.totalorder %s27, 0
      %p153 = por %p151, %p152
      %p154 = scmp.ne.s32.totalorder %s142, %s143
      %p155 = scmp.eq.s32.totalorder %s28, 1
      %p156 = por %p154, %p155
      %p158 = scmp.ne.s32.totalorder %s143, %s157
      %p159 = scmp.eq.s32.totalorder %s28, 0
      %p160 = por %p158, %p159
      %s162 = sadd.s32 %s161, 1
      %p165 = scmp.eq.s32.totalorder %s22, 1
      %p166 = scmp.ne.s32.totalorder %s161, %s163
      %p167 = scmp.eq.s32.totalorder %s22, 0
      %p168 = por %p166, %p167
      %p169 = scmp.ne.s32.totalorder %s161, %s163
      %p170 = scmp.eq.s32.totalorder %s27, 1
      %p171 = por %p169, %p170
      %p172 = scmp.ne.s32.totalorder %s163, %s164
      %p173 = scmp.eq.s32.totalorder %s27, 0
      %p174 = por %p172, %p173
      %p175 = scmp.ne.s32.totalorder %s163, %s164
      %p176 = scmp.eq.s32.totalorder %s28, 1
      %p177 = por %p175, %p176
      %p179 = scmp.ne.s32.totalorder %s164, %s178
      %p180 = scmp.eq.s32.totalorder %s28, 0
      %p181 = por %p179, %p180
      %s183 = sadd.s32 %s182, 1
      %p186 = scmp.eq.s32.totalorder %s22, 1
      %p187 = scmp.ne.s32.totalorder %s182, %s184
      %p188 = scmp.eq.s32.totalorder %s22, 0
      %p189 = por %p187, %p188
      %p190 = scmp.ne.s32.totalorder %s182, %s184
      %p191 = scmp.eq.s32.totalorder %s27, 1
      %p192 = por %p190, %p191
      %p193 = scmp.ne.s32.totalorder %s184, %s185
      %p194 = scmp.eq.s32.totalorder %s27, 0
      %p195 = por %p193, %p194
      %p196 = scmp.ne.s32.totalorder %s184, %s185
      %p197 = scmp.eq.s32.totalorder %s28, 1
      %p198 = por %p196, %p197
      %p200 = scmp.ne.s32.totalorder %s185, %s199
      %p201 = scmp.eq.s32.totalorder %s28, 0
      %p202 = por %p200, %p201
      %s204 = sadd.s32 %s203, 1
      %p207 = scmp.eq.s32.totalorder %s22, 1
      %p208 = scmp.ne.s32.totalorder %s203, %s205
      %p209 = scmp.eq.s32.totalorder %s22, 0
      %p210 = por %p208, %p209
      %p211 = scmp.ne.s32.totalorder %s203, %s205
      %p212 = scmp.eq.s32.totalorder %s27, 1
      %p213 = por %p211, %p212
      %p214 = scmp.ne.s32.totalorder %s205, %s206
      %p215 = scmp.eq.s32.totalorder %s27, 0
      %p216 = por %p214, %p215
      %p217 = scmp.ne.s32.totalorder %s205, %s206
      %p218 = scmp.eq.s32.totalorder %s28, 1
      %p219 = por %p217, %p218
      %p221 = scmp.ne.s32.totalorder %s206, %s220
      %p222 = scmp.eq.s32.totalorder %s28, 0
      %p223 = por %p221, %p222
      %s224 = ssub.s32 %s22, %s29
      %p225 = scmp.eq.s32.totalorder %s224, 0
      %s227 = sadd.s32 %s226, 1
      %s228 = scalar_select %p225, %s226, %s227
      %p231 = pneg %p225
      %p232 = scmp.eq.s32.totalorder %s22, 1
      %p233 = por %p231, %p232
      %p234 = scmp.ne.s32.totalorder %s226, %s229
      %p235 = scmp.eq.s32.totalorder %s22, 0
      %p236 = por %p234, %p235
      %p237 = scmp.ne.s32.totalorder %s226, %s229
      %p238 = scmp.eq.s32.totalorder %s27, 1
      %p239 = por %p237, %p238
      %p240 = scmp.ne.s32.totalorder %s229, %s230
      %p241 = scmp.eq.s32.totalorder %s27, 0
      %p242 = por %p240, %p241
      %p243 = scmp.ne.s32.totalorder %s229, %s230
      %p244 = scmp.eq.s32.totalorder %s28, 1
      %p245 = por %p243, %p244
      %p247 = scmp.ne.s32.totalorder %s230, %s246
      %p248 = scmp.eq.s32.totalorder %s28, 0
      %p249 = por %p247, %p248
      %p250 = scmp.le.s32.totalorder 1, %s22
      %p251 = scmp.lt.s32.totalorder %s22, 3
      %p252 = pnand %p250, %p251
      %p253 = pneg %p252
      // Predicated region
      $region9: #{_fused_call.1} parent=5 // pred_check
        _
      $region10: #{_fused_call.1} parent=5 // pred_check_branch
        %255 = sbr.rel (%p252) target = $region12
      $region11: #{_fused_call.1} parent=5 // pred_region
        %s256 = ssub.s32 %s22, 1
        // Predicated region
        $region13: #{_fused_call.1} parent=11 // pred_check
          %p257 = pneg %p69
        $region14: #{_fused_call.1} parent=11 // pred_check_branch
          %259 = sbr.rel (%p257) target = $region16
        $region15: #{_fused_call.1} parent=11 // pred_region
          _
        $region16: #{_fused_call.1} parent=11 // pred_fallthru
          _
        // Predicated region
        $region17: #{_fused_call.1} parent=11 // pred_check
          %p260 = pneg %p90
        $region18: #{_fused_call.1} parent=11 // pred_check_branch
          %262 = sbr.rel (%p260) target = $region20
        $region19: #{_fused_call.1} parent=11 // pred_region
          _
        $region20: #{_fused_call.1} parent=11 // pred_fallthru
          _
        // Predicated region
        $region21: #{_fused_call.1} parent=11 // pred_check
          %p263 = pneg %p111
        $region22: #{_fused_call.1} parent=11 // pred_check_branch
          %265 = sbr.rel (%p263) target = $region24
        $region23: #{_fused_call.1} parent=11 // pred_region
          %s267 = ssub.s32 1024, 1024
          %268 = vsyncadd [#allocation6], %s267
          %s269 = sshll.u32 [#allocation5], 4
          %s270 = int_to_ptr.vmem [resolvable:$true] %s269
          %275 = dma.hbm_to_vmem [thread:$0]  %s3, 1024, %s270, [#allocation6], 64, 64, 4
        $region24: #{_fused_call.1} parent=11 // pred_fallthru
          _
        // Predicated region
        $region25: #{_fused_call.1} parent=11 // pred_check
          %p276 = pneg %p132
        $region26: #{_fused_call.1} parent=11 // pred_check_branch
          %278 = sbr.rel (%p276) target = $region28
        $region27: #{_fused_call.1} parent=11 // pred_region
          _
        $region28: #{_fused_call.1} parent=11 // pred_fallthru
          _
        // Predicated region
        $region29: #{_fused_call.1} parent=11 // pred_check
          %p279 = pneg %p153
        $region30: #{_fused_call.1} parent=11 // pred_check_branch
          %281 = sbr.rel (%p279) target = $region32
        $region31: #{_fused_call.1} parent=11 // pred_region
          _
        $region32: #{_fused_call.1} parent=11 // pred_fallthru
          _
        // Predicated region
        $region33: #{_fused_call.1} parent=11 // pred_check
          %p282 = pneg %p174
        $region34: #{_fused_call.1} parent=11 // pred_check_branch
          %284 = sbr.rel (%p282) target = $region36
        $region35: #{_fused_call.1} parent=11 // pred_region
          _
        $region36: #{_fused_call.1} parent=11 // pred_fallthru
          _
        // Predicated region
        $region37: #{_fused_call.1} parent=11 // pred_check
          %p285 = pneg %p195
        $region38: #{_fused_call.1} parent=11 // pred_check_branch
          %287 = sbr.rel (%p285) target = $region40
        $region39: #{_fused_call.1} parent=11 // pred_region
          %s289 = ssub.s32 1024, 1024
          %290 = vsyncadd [#allocation6], %s289
          %s291 = sshll.u32 [#allocation7], 4
          %s292 = int_to_ptr.vmem [resolvable:$true] %s291
          %297 = dma.hbm_to_vmem [thread:$0]  %s7, 1024, %s292, [#allocation6], 64, 64, 4
        $region40: #{_fused_call.1} parent=11 // pred_fallthru
          _
        // Predicated region
        $region41: #{_fused_call.1} parent=11 // pred_check
          %p298 = pneg %p216
        $region42: #{_fused_call.1} parent=11 // pred_check_branch
          %300 = sbr.rel (%p298) target = $region44
        $region43: #{_fused_call.1} parent=11 // pred_region
          _
        $region44: #{_fused_call.1} parent=11 // pred_fallthru
          _
      $region12: #{_fused_call.1} parent=5 // pred_fallthru
        _
      %p301 = scmp.lt.s32.totalorder %s22, 2
      // Predicated region
      $region45: #{_fused_call.1} parent=5 // pred_check
        %p302 = pneg %p301
      $region46: #{_fused_call.1} parent=5 // pred_check_branch
        %304 = sbr.rel (%p302) target = $region48
      $region47: #{_fused_call.1} parent=5 // pred_region
        // Predicated region
        $region49: #{_fused_call.1} parent=47 // pred_check
          %p305 = pneg %p42
        $region50: #{_fused_call.1} parent=47 // pred_check_branch
          %307 = sbr.rel (%p305) target = $region52
        $region51: #{_fused_call.1} parent=47 // pred_region
          %s308 = sand.u32 %s32, 1
          %s309 = scalar_lea.sflag [#allocation3], %s308
          %s310 = sand.u32 %s32, 1
          %s311 = smul.addr %s310, 8
          %s312 = scalar_lea.vmem [#allocation2], %s311
          %s314 = ssub.s32 128, 128
          %315 = vsyncadd %s309, %s314
          %s316 = smul.addr %s22, 128
          %s317 = scalar_lea.hbm %s0, %s316
          %s319 = sshll.u32 %s312, 4
          %s320 = int_to_ptr.vmem [resolvable:$true] %s319
          %322 = dma.hbm_to_vmem [thread:$0]  %s317, 128, %s320, %s309
        $region52: #{_fused_call.1} parent=47 // pred_fallthru
          _
      $region48: #{_fused_call.1} parent=5 // pred_fallthru
        _
      %p323 = scmp.le.s32.totalorder 1, %s22
      %p324 = scmp.lt.s32.totalorder %s22, 3
      %p325 = pnand %p323, %p324
      %p326 = pneg %p325
      // Predicated region
      $region53: #{_fused_call.1} parent=5 // pred_check
        _
      $region54: #{_fused_call.1} parent=5 // pred_check_branch
        %328 = sbr.rel (%p325) target = $region56
      $region55: #{_fused_call.1} parent=5 // pred_region
        %s329 = ssub.s32 %s22, 1
        %s330 = sand.u32 %s35, 1
        %s331 = scalar_lea.sflag [#allocation3], %s330
        %s332 = sand.u32 %s35, 1
        %s333 = smul.addr %s332, 8
        %s334 = scalar_lea.vmem [#allocation2], %s333
        // Predicated region
        $region57: #{_fused_call.1} parent=55 // pred_check
          %p335 = pneg %p48
        $region58: #{_fused_call.1} parent=55 // pred_check_branch
          %337 = sbr.rel (%p335) target = $region60
        $region59: #{_fused_call.1} parent=55 // pred_region
          %338 = dma.done %s331, 128
        $region60: #{_fused_call.1} parent=55 // pred_fallthru
          _
        // Predicated region
        $region61: #{_fused_call.1} parent=55 // pred_check
          %p339 = pneg %p111
        $region62: #{_fused_call.1} parent=55 // pred_check_branch
          %341 = sbr.rel (%p339) target = $region64
        $region63: #{_fused_call.1} parent=55 // pred_region
          %342 = dma.done [#allocation6], 1024
        $region64: #{_fused_call.1} parent=55 // pred_fallthru
          _
        // Predicated region
        $region65: #{_fused_call.1} parent=55 // pred_check
          %p343 = pneg %p195
        $region66: #{_fused_call.1} parent=55 // pred_check_branch
          %345 = sbr.rel (%p343) target = $region68
        $region67: #{_fused_call.1} parent=55 // pred_region
          %346 = dma.done [#allocation6], 1024
        $region68: #{_fused_call.1} parent=55 // pred_fallthru
          _
        %s347 = sand.u32 %s35, 1
        %s348 = scalar_lea.sflag [#allocation3], %s347
        %s349 = sand.u32 %s35, 1
        %s350 = smul.addr %s349, 8
        %s351 = scalar_lea.vmem [#allocation2], %s350
        %p352 = pneg %p48
        %p353 = pneg %p45
        %p354 = pneg %p69
        %p355 = pneg %p66
        %p356 = pneg %p90
        %p357 = pneg %p87
        %p358 = pneg %p111
        %p359 = pneg %p108
        %p360 = pneg %p132
        %p361 = pneg %p129
        %p362 = pneg %p153
        %p363 = pneg %p150
        %p364 = pneg %p174
        %p365 = pneg %p171
        %p366 = pneg %p195
        %p367 = pneg %p192
        %p368 = pneg %p216
        %p369 = pneg %p213
        %p370 = pneg %p242
        %p371 = pneg %p239
        %s372 = sand.u32 %s229, 1
        %s373 = scalar_lea.sflag [#allocation4], %s372
        %s374 = sand.u32 %s229, 1
        %s375 = smul.addr %s374, 8
        %s376 = scalar_lea.vmem [#allocation8], %s375
        %v378 = vld [vmem:[%s334] sm:$0xff]
        %v379 = vld [vmem:[%s1] sm:$0x1]
        %v380 = vld [vmem:[%s2] sm:$0x1]
        %381 = vadd.xlane.f32.xlu0 %v378
        %v382 = vpop.xlane.xlu0 %381
        %v383 = vmul.f32 %v382, 0.03125
        %v384 = vsub.f32 %v378, %v383
        %v385 = vlaneseq
        %v386 = vand.u32 %v385, 127
        %vm387 = vcmp.lt.s32.totalorder %v386, 32
        %v388 = vsel %vm387, 1, 0
        %vm389 = vcmp.eq.s32.totalorder %v388, 1
        %v390 = vsel %vm389, %v384, 0.0
        %v391 = vmul.f32 %v390, %v390
        %392 = vadd.xlane.f32.xlu0 %v391
        %v393 = vpop.xlane.xlu0 %392
        %v394 = vmul.f32 %v393, 0.03125
        %v395 = vadd.f32 %v394, 1e-05
        %v396 = vrsqrt.pop %v395
        %v397 = vmul.f32 %v384, %v396
        %v399 = vlaneseq
        %v400 = vshrl.u32 %v399, 7
        %v401 = vsub.s32 0, %v400
        %v402 = vrot.slane %v379, %v401
        %v404 = vmul.f32 %v397, %v402
        %v406 = vlaneseq
        %v407 = vshrl.u32 %v406, 7
        %v408 = vsub.s32 0, %v407
        %v409 = vrot.slane %v380, %v408
        %v411 = vadd.f32 %v404, %v409
        %v412 = vmul.f32 %v411, 0.5
        %v413 = vmul.f32 %v411, 0.70710677
        %v414 = verf.f32.pop %v413
        %v415 = vadd.f32 %v414, 1.0
        %v416 = vmul.f32 %v412, %v415
        %v417 = vpack.c.bf16 %v416, %v416
        %v418 = vld [vmem:[#allocation5] sm:$0xf]
        %v419 = vld [vmem:[#allocation5 + $0x4] sm:$0xf]
        %v420 = vld [vmem:[#allocation5 + $0x8] sm:$0xf]
        %v421 = vld [vmem:[#allocation5 + $0xc] sm:$0xf]
        %v422 = vld [vmem:[#allocation5 + $0x10] sm:$0xf]
        %v423 = vld [vmem:[#allocation5 + $0x14] sm:$0xf]
        %v424 = vld [vmem:[#allocation5 + $0x18] sm:$0xf]
        %v425 = vld [vmem:[#allocation5 + $0x1c] sm:$0xf]
        %v426 = vld [vmem:[#allocation5 + $0x20] sm:$0xf]
        %v427 = vld [vmem:[#allocation5 + $0x24] sm:$0xf]
        %v428 = vld [vmem:[#allocation5 + $0x28] sm:$0xf]
        %v429 = vld [vmem:[#allocation5 + $0x2c] sm:$0xf]
        %v430 = vld [vmem:[#allocation5 + $0x30] sm:$0xf]
        %v431 = vld [vmem:[#allocation5 + $0x34] sm:$0xf]
        %v432 = vld [vmem:[#allocation5 + $0x38] sm:$0xf]
        %v433 = vld [vmem:[#allocation5 + $0x3c] sm:$0xf]
        %v434 = vld [vmem:[%s4] sm:$0x1]
        %v436 = vlaneseq
        %v437 = vshrl.u32 %v436, 7
        %v438 = vsub.s32 0, %v437
        %v439 = vrot.slane %v434, %v438
        %v457 = vunpack.c.l.b16 %v418
        %v458 = vunpack.c.l.b16 %v419
        %v459 = vunpack.c.l.b16 %v420
        %v460 = vunpack.c.l.b16 %v421
        %v461 = vunpack.c.l.b16 %v422
        %v462 = vunpack.c.l.b16 %v423
        %v463 = vunpack.c.l.b16 %v424
        %v464 = vunpack.c.l.b16 %v425
        %v465 = vunpack.c.l.b16 %v426
        %v466 = vunpack.c.l.b16 %v427
        %v467 = vunpack.c.l.b16 %v428
        %v468 = vunpack.c.l.b16 %v429
        %v469 = vunpack.c.l.b16 %v430
        %v470 = vunpack.c.l.b16 %v431
        %v471 = vunpack.c.l.b16 %v432
        %v472 = vunpack.c.l.b16 %v433
        %v473 = vpack.c.b16 %v458, %v457
        %v474 = vpack.c.b16 %v460, %v459
        %v475 = vpack.c.b16 %v462, %v461
        %v476 = vpack.c.b16 %v464, %v463
        %v477 = vpack.c.b16 %v466, %v465
        %v478 = vpack.c.b16 %v468, %v467
        %v479 = vpack.c.b16 %v470, %v469
        %v480 = vpack.c.b16 %v472, %v471
        %489 = vmatprep.subr.bf16.mxu0 0
        %490 = vmatpush1.bf16.msra.mxu0 %v480
        %491 = vmatprep.subr.bf16.mxu0 0
        %492 = vmatpush1.bf16.msra.mxu0 %v479
        %493 = vmatprep.subr.bf16.mxu0 0
        %494 = vmatpush1.bf16.msra.mxu0 %v478
        %495 = vmatprep.subr.bf16.mxu0 0
        %496 = vmatpush1.bf16.msra.mxu0 %v477
        %497 = vmatprep.subr.bf16.mxu0 0
        %498 = vmatpush1.bf16.msra.mxu0 %v476
        %499 = vmatprep.subr.bf16.mxu0 0
        %500 = vmatpush1.bf16.msra.mxu0 %v475
        %501 = vmatprep.subr.bf16.mxu0 0
        %502 = vmatpush1.bf16.msra.mxu0 %v474
        %503 = vmatprep.subr.bf16.mxu0 0
        %504 = vmatpush1.bf16.msra.mxu0 %v473
        %505 = vmatprep.subr.bf16.mxu0 0
        %506 = vmatpush2.bf16.msra.mxu0 0
        %507 = vmatprep.subr.bf16.mxu0 0
        %508 = vmatpush2.bf16.msra.mxu0 0
        %509 = vmatprep.subr.bf16.mxu0 0
        %510 = vmatpush2.bf16.msra.mxu0 0
        %511 = vmatprep.subr.bf16.mxu0 0
        %512 = vmatpush2.bf16.msra.mxu0 0
        %513 = vmatprep.subr.bf16.mxu0 0
        %514 = vmatpush2.bf16.msra.mxu0 0
        %515 = vmatprep.subr.bf16.mxu0 0
        %516 = vmatpush2.bf16.msra.mxu0 0
        %517 = vmatprep.subr.bf16.mxu0 0
        %518 = vmatpush2.bf16.msra.mxu0 0
        %519 = vmatprep.subr.bf16.mxu0 0
        %520 = vmatpush2.bf16.msra.mxu0 0
        %521 = vmatprep.mubr.bf16.mxu0 0
        %522 = vmatmul.mubr.bf16.gmra.mxu0 %v417
        %v523 = vpop.f32.mrf.mxu0
        %v524 = vadd.f32 %v439, %v523
        %v525 = vpop.f32.mrf.mxu0
        %v526 = vpop.f32.mrf.mxu0
        %v527 = vpop.f32.mrf.mxu0
        %528 = vdwg.mxu0
        %v529 = vld [vmem:[%s5] sm:$0x1]
        %v530 = vld [vmem:[%s6] sm:$0x1]
        %531 = vadd.xlane.f32.xlu0 %v524
        %v532 = vpop.xlane.xlu0 %531
        %v533 = vmul.f32 %v532, 0.015625
        %v534 = vsub.f32 %v524, %v533
        %vm535 = vcmp.lt.s32.totalorder %v386, 64
        %v536 = vsel %vm535, 1, 0
        %vm537 = vcmp.eq.s32.totalorder %v536, 1
        %v538 = vsel %vm537, %v534, 0.0
        %v539 = vmul.f32 %v538, %v538
        %540 = vadd.xlane.f32.xlu0 %v539
        %v541 = vpop.xlane.xlu0 %540
        %v542 = vmul.f32 %v541, 0.015625
        %v543 = vadd.f32 %v542, 1e-05
        %v544 = vrsqrt.pop %v543
        %v545 = vmul.f32 %v534, %v544
        %v547 = vlaneseq
        %v548 = vshrl.u32 %v547, 7
        %v549 = vsub.s32 0, %v548
        %v550 = vrot.slane %v529, %v549
        %v552 = vmul.f32 %v545, %v550
        %v554 = vlaneseq
        %v555 = vshrl.u32 %v554, 7
        %v556 = vsub.s32 0, %v555
        %v557 = vrot.slane %v530, %v556
        %v559 = vadd.f32 %v552, %v557
        %v560 = vmul.f32 %v559, 0.5
        %v561 = vmul.f32 %v559, 0.70710677
        %v562 = verf.f32.pop %v561
        %v563 = vadd.f32 %v562, 1.0
        %v564 = vmul.f32 %v560, %v563
        %v565 = vpack.c.bf16 %v564, %v564
        %v566 = vld [vmem:[#allocation7] sm:$0xf]
        %v567 = vld [vmem:[#allocation7 + $0x4] sm:$0xf]
        %v568 = vld [vmem:[#allocation7 + $0x8] sm:$0xf]
        %v569 = vld [vmem:[#allocation7 + $0xc] sm:$0xf]
        %v570 = vld [vmem:[#allocation7 + $0x10] sm:$0xf]
        %v571 = vld [vmem:[#allocation7 + $0x14] sm:$0xf]
        %v572 = vld [vmem:[#allocation7 + $0x18] sm:$0xf]
        %v573 = vld [vmem:[#allocation7 + $0x1c] sm:$0xf]
        %v574 = vld [vmem:[#allocation7 + $0x20] sm:$0xf]
        %v575 = vld [vmem:[#allocation7 + $0x24] sm:$0xf]
        %v576 = vld [vmem:[#allocation7 + $0x28] sm:$0xf]
        %v577 = vld [vmem:[#allocation7 + $0x2c] sm:$0xf]
        %v578 = vld [vmem:[#allocation7 + $0x30] sm:$0xf]
        %v579 = vld [vmem:[#allocation7 + $0x34] sm:$0xf]
        %v580 = vld [vmem:[#allocation7 + $0x38] sm:$0xf]
        %v581 = vld [vmem:[#allocation7 + $0x3c] sm:$0xf]
        %v582 = vld [vmem:[%s8] sm:$0x1]
        %v584 = vlaneseq
        %v585 = vshrl.u32 %v584, 7
        %v586 = vsub.s32 0, %v585
        %v587 = vrot.slane %v582, %v586
        %v605 = vunpack.c.l.b16 %v566
        %v606 = vunpack.c.l.b16 %v567
        %v607 = vunpack.c.l.b16 %v568
        %v608 = vunpack.c.l.b16 %v569
        %v609 = vunpack.c.l.b16 %v570
        %v610 = vunpack.c.l.b16 %v571
        %v611 = vunpack.c.l.b16 %v572
        %v612 = vunpack.c.l.b16 %v573
        %v613 = vunpack.c.l.b16 %v574
        %v614 = vunpack.c.l.b16 %v575
        %v615 = vunpack.c.l.b16 %v576
        %v616 = vunpack.c.l.b16 %v577
        %v617 = vunpack.c.l.b16 %v578
        %v618 = vunpack.c.l.b16 %v579
        %v619 = vunpack.c.l.b16 %v580
        %v620 = vunpack.c.l.b16 %v581
        %v621 = vpack.c.b16 %v606, %v605
        %v622 = vpack.c.b16 %v608, %v607
        %v623 = vpack.c.b16 %v610, %v609
        %v624 = vpack.c.b16 %v612, %v611
        %v625 = vpack.c.b16 %v614, %v613
        %v626 = vpack.c.b16 %v616, %v615
        %v627 = vpack.c.b16 %v618, %v617
        %v628 = vpack.c.b16 %v620, %v619
        %637 = vmatprep.subr.bf16.mxu0 0
        %638 = vmatpush1.bf16.msra.mxu0 %v628
        %639 = vmatprep.subr.bf16.mxu0 0
        %640 = vmatpush1.bf16.msra.mxu0 %v627
        %641 = vmatprep.subr.bf16.mxu0 0
        %642 = vmatpush1.bf16.msra.mxu0 %v626
        %643 = vmatprep.subr.bf16.mxu0 0
        %644 = vmatpush1.bf16.msra.mxu0 %v625
        %645 = vmatprep.subr.bf16.mxu0 0
        %646 = vmatpush1.bf16.msra.mxu0 %v624
        %647 = vmatprep.subr.bf16.mxu0 0
        %648 = vmatpush1.bf16.msra.mxu0 %v623
        %649 = vmatprep.subr.bf16.mxu0 0
        %650 = vmatpush1.bf16.msra.mxu0 %v622
        %651 = vmatprep.subr.bf16.mxu0 0
        %652 = vmatpush1.bf16.msra.mxu0 %v621
        %653 = vmatprep.subr.bf16.mxu0 0
        %654 = vmatpush2.bf16.msra.mxu0 0
        %655 = vmatprep.subr.bf16.mxu0 0
        %656 = vmatpush2.bf16.msra.mxu0 0
        %657 = vmatprep.subr.bf16.mxu0 0
        %658 = vmatpush2.bf16.msra.mxu0 0
        %659 = vmatprep.subr.bf16.mxu0 0
        %660 = vmatpush2.bf16.msra.mxu0 0
        %661 = vmatprep.subr.bf16.mxu0 0
        %662 = vmatpush2.bf16.msra.mxu0 0
        %663 = vmatprep.subr.bf16.mxu0 0
        %664 = vmatpush2.bf16.msra.mxu0 0
        %665 = vmatprep.subr.bf16.mxu0 0
        %666 = vmatpush2.bf16.msra.mxu0 0
        %667 = vmatprep.subr.bf16.mxu0 0
        %668 = vmatpush2.bf16.msra.mxu0 0
        %669 = vmatprep.mubr.bf16.mxu0 0
        %670 = vmatmul.mubr.bf16.gmra.mxu0 %v565
        %v671 = vpop.f32.mrf.mxu0
        %v672 = vadd.f32 %v587, %v671
        %v673 = vpop.f32.mrf.mxu0
        %v674 = vpop.f32.mrf.mxu0
        %v675 = vpop.f32.mrf.mxu0
        %676 = vdwg.mxu0
        %v677 = vadd.f32 %v672, %v378
        %678 = vst [vmem:[%s376] sm:$0xff] %v677
        %s679 = sand.u32 %s229, 1
        %s680 = scalar_lea.sflag [#allocation4], %s679
        %s681 = sand.u32 %s229, 1
        %s682 = smul.addr %s681, 8
        %s683 = scalar_lea.vmem [#allocation8], %s682
        // Predicated region
        $region69: #{_fused_call.1} parent=55 // pred_check
          %p684 = pneg %p239
        $region70: #{_fused_call.1} parent=55 // pred_check_branch
          %686 = sbr.rel (%p684) target = $region72
        $region71: #{_fused_call.1} parent=55 // pred_region
          %s688 = ssub.s32 128, 128
          %689 = vsyncadd %s680, %s688
          %s690 = smul.addr %s27, 128
          %s691 = scalar_lea.hbm %s9, %s690
          %s693 = sshll.u32 %s683, 4
          %s694 = int_to_ptr.vmem [resolvable:$true] %s693
          %696 = dma.vmem_to_hbm [thread:$0]  %s694, 128, %s691, %s680
        $region72: #{_fused_call.1} parent=55 // pred_fallthru
          _
      $region56: #{_fused_call.1} parent=5 // pred_fallthru
        _
      %p697 = scmp.le.s32.totalorder 2, %s22
      // Predicated region
      $region73: #{_fused_call.1} parent=5 // pred_check
        %p698 = pneg %p697
      $region74: #{_fused_call.1} parent=5 // pred_check_branch
        %700 = sbr.rel (%p698) target = $region76
      $region75: #{_fused_call.1} parent=5 // pred_region
        %s701 = ssub.s32 %s22, 2
        // Predicated region
        $region77: #{_fused_call.1} parent=75 // pred_check
          %p702 = pneg %p245
        $region78: #{_fused_call.1} parent=75 // pred_check_branch
          %704 = sbr.rel (%p702) target = $region80
        $region79: #{_fused_call.1} parent=75 // pred_region
          %s705 = sand.u32 %s230, 1
          %s706 = scalar_lea.sflag [#allocation4], %s705
          %s707 = sand.u32 %s230, 1
          %s708 = smul.addr %s707, 8
          %s709 = scalar_lea.vmem [#allocation8], %s708
          %710 = dma.done %s706, 128
        $region80: #{_fused_call.1} parent=75 // pred_fallthru
          _
      $region76: #{_fused_call.1} parent=5 // pred_fallthru
        _
    $region6: #{_fused_call.1} parent=1 // loop_footer
      %s26 = sadd.s32 1, %s22
    $region7: #{_fused_call.1} parent=1 // loop_footer_branch
      %21 = sbr.rel target = $region3
    $region8: #{_fused_call.1} parent=1 // loop_exit
      _
    %711 = vsyncpa [#allocation3], 1
    %s712 = scalar_lea.sflag [#allocation3], 1
    %713 = vsyncpa %s712, 1
    %714 = vsyncpa [#allocation6], 1
    %715 = vsyncpa [#allocation4], 1
    %s716 = scalar_lea.sflag [#allocation4], 1
    %717 = vsyncpa %s716, 1

// kernel: _fused_call.1
$region0: #{_fused_call.1}
  #allocation0 [shape = 'u32[]', space=smem, size = 0x4, offset = 0x4, fixed_abs, tag = 'smem constant byte address 0x4 - core index']
  #allocation1 [shape = 'u32[144,128]{1,0:T(1,128)}', space=vmem, size = 0x12000, scoped, tag = 'internal scratch']
  %s0 = inlined_call_operand.hbm [shape: f32[16,128], index: 0, kind: input, shape index: {}]
  %s1 = inlined_call_operand.vmem [shape: f32[1,128], index: 1, kind: input, shape index: {}]
  %s2 = inlined_call_operand.vmem [shape: f32[1,128], index: 2, kind: input, shape index: {}]
  %s3 = inlined_call_operand.hbm [shape: bf16[128,128], index: 3, kind: input, shape index: {}]
  %s4 = inlined_call_operand.vmem [shape: f32[1,128], index: 4, kind: input, shape index: {}]
  %s5 = inlined_call_operand.vmem [shape: f32[1,128], index: 5, kind: input, shape index: {}]
  %s6 = inlined_call_operand.vmem [shape: f32[1,128], index: 6, kind: input, shape index: {}]
  %s7 = inlined_call_operand.hbm [shape: bf16[128,128], index: 7, kind: input, shape index: {}]
  %s8 = inlined_call_operand.vmem [shape: f32[1,128], index: 8, kind: input, shape index: {}]
  %s9 = inlined_call_operand.hbm [shape: f32[16,128], index: 9, kind: output, shape index: {}]
  %s10 = sld [smem:[#allocation0]]
  $region81: #{_fused_call.1} parent=0
    _
  %s12 = ssub.s32 1, %s10
  %s13 = scalar_select 0, %s12, %s10
  $region1: #{_fused_call.1} parent=0
    #allocation2 [shape = 'u8[8192]{0}', space=vmem, size = 0x2000, scoped, tag = 'input window, operand 0']
    #allocation3 [shape = 's32[2]{0}', space=sflag, size = 0x8, scoped, tag = 'scoped memory for _fused_call.1']
    #allocation4 [shape = 's32[2]{0}', space=sflag, size = 0x8, scoped, tag = 'scoped memory for _fused_call.1']
    #allocation5 [shape = 'u8[32768]{0}', space=vmem, size = 0x8000, scoped, tag = 'input window, operand 3, single buffered']
    #allocation6 [shape = 's32[1]{0}', space=sflag, size = 0x4, scoped, tag = 'scoped memory for _fused_call.1']
    #allocation7 [shape = 'u8[32768]{0}', space=vmem, size = 0x8000, scoped, tag = 'input window, operand 7, single buffered']
    #allocation8 [shape = 'u8[8192]{0}', space=vmem, size = 0x2000, scoped, tag = 'output window, operand 0']
    %14 = vsyncpa [#allocation3], 0
    %s15 = scalar_lea.sflag [#allocation3], 1
    %16 = vsyncpa %s15, 0
    %17 = vsyncpa [#allocation6], 0
    %18 = vsyncpa [#allocation4], 0
    %s19 = scalar_lea.sflag [#allocation4], 1
    %20 = vsyncpa %s19, 0
    loop: start=0, step=1, limit=4
    $region2: #{_fused_call.1} parent=1 // loop_pre_header
      _
    $region3: #{_fused_call.1} parent=1 // loop_header
      %s22 = sphi 0, %s26
      %p23 = scmp.ge.s32.totalorder %s22, 4
      %s32 = sphi 0, %s34
      %s35 = sphi 0, %s32
      %s36 = sphi 0, %s35
      %s52 = sphi 0, %s36
      %s56 = sphi 0, %s56
      %s58 = sphi 0, %s56
      %s59 = sphi 0, %s58
      %s73 = sphi 0, %s59
      %s77 = sphi 0, %s77
      %s79 = sphi 0, %s77
      %s80 = sphi 0, %s79
      %s94 = sphi 0, %s80
      %s98 = sphi 0, %s98
      %s100 = sphi 0, %s98
      %s101 = sphi 0, %s100
      %s115 = sphi 0, %s101
      %s119 = sphi 0, %s119
      %s121 = sphi 0, %s119
      %s122 = sphi 0, %s121
      %s136 = sphi 0, %s122
      %s140 = sphi 0, %s140
      %s142 = sphi 0, %s140
      %s143 = sphi 0, %s142
      %s157 = sphi 0, %s143
      %s161 = sphi 0, %s161
      %s163 = sphi 0, %s161
      %s164 = sphi 0, %s163
      %s178 = sphi 0, %s164
      %s182 = sphi 0, %s182
      %s184 = sphi 0, %s182
      %s185 = sphi 0, %s184
      %s199 = sphi 0, %s185
      %s203 = sphi 0, %s203
      %s205 = sphi 0, %s203
      %s206 = sphi 0, %s205
      %s220 = sphi 0, %s206
      %s226 = sphi 0, %s228
      %s229 = sphi 0, %s226
      %s230 = sphi 0, %s229
      %s246 = sphi 0, %s230
    $region4: #{_fused_call.1} parent=1 // loop_header_branch
      %25 = sbr.rel (%p23) target = $region8
    $region5: #{_fused_call.1} parent=1 // loop_body
      %s27 = ssub.s32 %s22, 1
      %s28 = ssub.s32 %s22, 2
      %s29 = sadd.s32 %s22, 1
      %s30 = ssub.s32 %s22, %s29
      %p31 = scmp.eq.s32.totalorder %s30, 0
      %s33 = sadd.s32 %s32, 1
      %s34 = scalar_select %p31, %s32, %s33
      %p37 = pneg %p31
      %p38 = scmp.eq.s32.totalorder %s22, 1
      %p39 = por %p37, %p38
      %p40 = scmp.ne.s32.totalorder %s32, %s35
      %p41 = scmp.eq.s32.totalorder %s22, 0
      %p42 = por %p40, %p41
      %p43 = scmp.ne.s32.totalorder %s32, %s35
      %p44 = scmp.eq.s32.totalorder %s27, 1
      %p45 = por %p43, %p44
      %p46 = scmp.ne.s32.totalorder %s35, %s36
      %p47 = scmp.eq.s32.totalorder %s27, 0
      %p48 = por %p46, %p47
      %p49 = scmp.ne.s32.totalorder %s35, %s36
      %p50 = scmp.eq.s32.totalorder %s28, 1
      %p51 = por %p49, %p50
      %p53 = scmp.ne.s32.totalorder %s36, %s52
      %p54 = scmp.eq.s32.totalorder %s28, 0
      %p55 = por %p53, %p54
      %s57 = sadd.s32 %s56, 1
      %p60 = scmp.eq.s32.totalorder %s22, 1
      %p61 = scmp.ne.s32.totalorder %s56, %s58
      %p62 = scmp.eq.s32.totalorder %s22, 0
      %p63 = por %p61, %p62
      %p64 = scmp.ne.s32.totalorder %s56, %s58
      %p65 = scmp.eq.s32.totalorder %s27, 1
      %p66 = por %p64, %p65
      %p67 = scmp.ne.s32.totalorder %s58, %s59
      %p68 = scmp.eq.s32.totalorder %s27, 0
      %p69 = por %p67, %p68
      %p70 = scmp.ne.s32.totalorder %s58, %s59
      %p71 = scmp.eq.s32.totalorder %s28, 1
      %p72 = por %p70, %p71
      %p74 = scmp.ne.s32.totalorder %s59, %s73
      %p75 = scmp.eq.s32.totalorder %s28, 0
      %p76 = por %p74, %p75
      %s78 = sadd.s32 %s77, 1
      %p81 = scmp.eq.s32.totalorder %s22, 1
      %p82 = scmp.ne.s32.totalorder %s77, %s79
      %p83 = scmp.eq.s32.totalorder %s22, 0
      %p84 = por %p82, %p83
      %p85 = scmp.ne.s32.totalorder %s77, %s79
      %p86 = scmp.eq.s32.totalorder %s27, 1
      %p87 = por %p85, %p86
      %p88 = scmp.ne.s32.totalorder %s79, %s80
      %p89 = scmp.eq.s32.totalorder %s27, 0
      %p90 = por %p88, %p89
      %p91 = scmp.ne.s32.totalorder %s79, %s80
      %p92 = scmp.eq.s32.totalorder %s28, 1
      %p93 = por %p91, %p92
      %p95 = scmp.ne.s32.totalorder %s80, %s94
      %p96 = scmp.eq.s32.totalorder %s28, 0
      %p97 = por %p95, %p96
      %s99 = sadd.s32 %s98, 1
      %p102 = scmp.eq.s32.totalorder %s22, 1
      %p103 = scmp.ne.s32.totalorder %s98, %s100
      %p104 = scmp.eq.s32.totalorder %s22, 0
      %p105 = por %p103, %p104
      %p106 = scmp.ne.s32.totalorder %s98, %s100
      %p107 = scmp.eq.s32.totalorder %s27, 1
      %p108 = por %p106, %p107
      %p109 = scmp.ne.s32.totalorder %s100, %s101
      %p110 = scmp.eq.s32.totalorder %s27, 0
      %p111 = por %p109, %p110
      %p112 = scmp.ne.s32.totalorder %s100, %s101
      %p113 = scmp.eq.s32.totalorder %s28, 1
      %p114 = por %p112, %p113
      %p116 = scmp.ne.s32.totalorder %s101, %s115
      %p117 = scmp.eq.s32.totalorder %s28, 0
      %p118 = por %p116, %p117
      %s120 = sadd.s32 %s119, 1
      %p123 = scmp.eq.s32.totalorder %s22, 1
      %p124 = scmp.ne.s32.totalorder %s119, %s121
      %p125 = scmp.eq.s32.totalorder %s22, 0
      %p126 = por %p124, %p125
      %p127 = scmp.ne.s32.totalorder %s119, %s121
      %p128 = scmp.eq.s32.totalorder %s27, 1
      %p129 = por %p127, %p128
      %p130 = scmp.ne.s32.totalorder %s121, %s122
      %p131 = scmp.eq.s32.totalorder %s27, 0
      %p132 = por %p130, %p131
      %p133 = scmp.ne.s32.totalorder %s121, %s122
      %p134 = scmp.eq.s32.totalorder %s28, 1
      %p135 = por %p133, %p134
      %p137 = scmp.ne.s32.totalorder %s122, %s136
      %p138 = scmp.eq.s32.totalorder %s28, 0
      %p139 = por %p137, %p138
      %s141 = sadd.s32 %s140, 1
      %p144 = scmp.eq.s32.totalorder %s22, 1
      %p145 = scmp.ne.s32.totalorder %s140, %s142
      %p146 = scmp.eq.s32.totalorder %s22, 0
      %p147 = por %p145, %p146
      %p148 = scmp.ne.s32.totalorder %s140, %s142
      %p149 = scmp.eq.s32.totalorder %s27, 1
      %p150 = por %p148, %p149
      %p151 = scmp.ne.s32.totalorder %s142, %s143
      %p152 = scmp.eq.s32.totalorder %s27, 0
      %p153 = por %p151, %p152
      %p154 = scmp.ne.s32.totalorder %s142, %s143
      %p155 = scmp.eq.s32.totalorder %s28, 1
      %p156 = por %p154, %p155
      %p158 = scmp.ne.s32.totalorder %s143, %s157
      %p159 = scmp.eq.s32.totalorder %s28, 0
      %p160 = por %p158, %p159
      %s162 = sadd.s32 %s161, 1
      %p165 = scmp.eq.s32.totalorder %s22, 1
      %p166 = scmp.ne.s32.totalorder %s161, %s163
      %p167 = scmp.eq.s32.totalorder %s22, 0
      %p168 = por %p166, %p167
      %p169 = scmp.ne.s32.totalorder %s161, %s163
      %p170 = scmp.eq.s32.totalorder %s27, 1
      %p171 = por %p169, %p170
      %p172 = scmp.ne.s32.totalorder %s163, %s164
      %p173 = scmp.eq.s32.totalorder %s27, 0
      %p174 = por %p172, %p173
      %p175 = scmp.ne.s32.totalorder %s163, %s164
      %p176 = scmp.eq.s32.totalorder %s28, 1
      %p177 = por %p175, %p176
      %p179 = scmp.ne.s32.totalorder %s164, %s178
      %p180 = scmp.eq.s32.totalorder %s28, 0
      %p181 = por %p179, %p180
      %s183 = sadd.s32 %s182, 1
      %p186 = scmp.eq.s32.totalorder %s22, 1
      %p187 = scmp.ne.s32.totalorder %s182, %s184
      %p188 = scmp.eq.s32.totalorder %s22, 0
      %p189 = por %p187, %p188
      %p190 = scmp.ne.s32.totalorder %s182, %s184
      %p191 = scmp.eq.s32.totalorder %s27, 1
      %p192 = por %p190, %p191
      %p193 = scmp.ne.s32.totalorder %s184, %s185
      %p194 = scmp.eq.s32.totalorder %s27, 0
      %p195 = por %p193, %p194
      %p196 = scmp.ne.s32.totalorder %s184, %s185
      %p197 = scmp.eq.s32.totalorder %s28, 1
      %p198 = por %p196, %p197
      %p200 = scmp.ne.s32.totalorder %s185, %s199
      %p201 = scmp.eq.s32.totalorder %s28, 0
      %p202 = por %p200, %p201
      %s204 = sadd.s32 %s203, 1
      %p207 = scmp.eq.s32.totalorder %s22, 1
      %p208 = scmp.ne.s32.totalorder %s203, %s205
      %p209 = scmp.eq.s32.totalorder %s22, 0
      %p210 = por %p208, %p209
      %p211 = scmp.ne.s32.totalorder %s203, %s205
      %p212 = scmp.eq.s32.totalorder %s27, 1
      %p213 = por %p211, %p212
      %p214 = scmp.ne.s32.totalorder %s205, %s206
      %p215 = scmp.eq.s32.totalorder %s27, 0
      %p216 = por %p214, %p215
      %p217 = scmp.ne.s32.totalorder %s205, %s206
      %p218 = scmp.eq.s32.totalorder %s28, 1
      %p219 = por %p217, %p218
      %p221 = scmp.ne.s32.totalorder %s206, %s220
      %p222 = scmp.eq.s32.totalorder %s28, 0
      %p223 = por %p221, %p222
      %s224 = ssub.s32 %s22, %s29
      %p225 = scmp.eq.s32.totalorder %s224, 0
      %s227 = sadd.s32 %s226, 1
      %s228 = scalar_select %p225, %s226, %s227
      %p231 = pneg %p225
      %p232 = scmp.eq.s32.totalorder %s22, 1
      %p233 = por %p231, %p232
      %p234 = scmp.ne.s32.totalorder %s226, %s229
      %p235 = scmp.eq.s32.totalorder %s22, 0
      %p236 = por %p234, %p235
      %p237 = scmp.ne.s32.totalorder %s226, %s229
      %p238 = scmp.eq.s32.totalorder %s27, 1
      %p239 = por %p237, %p238
      %p240 = scmp.ne.s32.totalorder %s229, %s230
      %p241 = scmp.eq.s32.totalorder %s27, 0
      %p242 = por %p240, %p241
      %p243 = scmp.ne.s32.totalorder %s229, %s230
      %p244 = scmp.eq.s32.totalorder %s28, 1
      %p245 = por %p243, %p244
      %p247 = scmp.ne.s32.totalorder %s230, %s246
      %p248 = scmp.eq.s32.totalorder %s28, 0
      %p249 = por %p247, %p248
      %p250 = scmp.le.s32.totalorder 1, %s22
      %p251 = scmp.lt.s32.totalorder %s22, 3
      %p252 = pnand %p250, %p251
      %p253 = pneg %p252
      // Predicated region
      $region9: #{_fused_call.1} parent=5 // pred_check
        _
      $region10: #{_fused_call.1} parent=5 // pred_check_branch
        %255 = sbr.rel (%p252) target = $region12
      $region11: #{_fused_call.1} parent=5 // pred_region
        %s256 = ssub.s32 %s22, 1
        // Predicated region
        $region13: #{_fused_call.1} parent=11 // pred_check
          %p257 = pneg %p69
        $region14: #{_fused_call.1} parent=11 // pred_check_branch
          %259 = sbr.rel (%p257) target = $region16
        $region15: #{_fused_call.1} parent=11 // pred_region
          _
        $region16: #{_fused_call.1} parent=11 // pred_fallthru
          _
        // Predicated region
        $region17: #{_fused_call.1} parent=11 // pred_check
          %p260 = pneg %p90
        $region18: #{_fused_call.1} parent=11 // pred_check_branch
          %262 = sbr.rel (%p260) target = $region20
        $region19: #{_fused_call.1} parent=11 // pred_region
          _
        $region20: #{_fused_call.1} parent=11 // pred_fallthru
          _
        // Predicated region
        $region21: #{_fused_call.1} parent=11 // pred_check
          %p263 = pneg %p111
        $region22: #{_fused_call.1} parent=11 // pred_check_branch
          %265 = sbr.rel (%p263) target = $region24
        $region23: #{_fused_call.1} parent=11 // pred_region
          %s267 = ssub.s32 1024, 1024
          %268 = vsyncadd [#allocation6], %s267
          %s269 = sshll.u32 [#allocation5], 4
          %s270 = int_to_ptr.vmem [resolvable:$true] %s269
          %275 = dma.hbm_to_vmem [thread:$0]  %s3, 1024, %s270, [#allocation6], 64, 64, 4
        $region24: #{_fused_call.1} parent=11 // pred_fallthru
          _
        // Predicated region
        $region25: #{_fused_call.1} parent=11 // pred_check
          %p276 = pneg %p132
        $region26: #{_fused_call.1} parent=11 // pred_check_branch
          %278 = sbr.rel (%p276) target = $region28
        $region27: #{_fused_call.1} parent=11 // pred_region
          _
        $region28: #{_fused_call.1} parent=11 // pred_fallthru
          _
        // Predicated region
        $region29: #{_fused_call.1} parent=11 // pred_check
          %p279 = pneg %p153
        $region30: #{_fused_call.1} parent=11 // pred_check_branch
          %281 = sbr.rel (%p279) target = $region32
        $region31: #{_fused_call.1} parent=11 // pred_region
          _
        $region32: #{_fused_call.1} parent=11 // pred_fallthru
          _
        // Predicated region
        $region33: #{_fused_call.1} parent=11 // pred_check
          %p282 = pneg %p174
        $region34: #{_fused_call.1} parent=11 // pred_check_branch
          %284 = sbr.rel (%p282) target = $region36
        $region35: #{_fused_call.1} parent=11 // pred_region
          _
        $region36: #{_fused_call.1} parent=11 // pred_fallthru
          _
        // Predicated region
        $region37: #{_fused_call.1} parent=11 // pred_check
          %p285 = pneg %p195
        $region38: #{_fused_call.1} parent=11 // pred_check_branch
          %287 = sbr.rel (%p285) target = $region40
        $region39: #{_fused_call.1} parent=11 // pred_region
          %s289 = ssub.s32 1024, 1024
          %290 = vsyncadd [#allocation6], %s289
          %s291 = sshll.u32 [#allocation7], 4
          %s292 = int_to_ptr.vmem [resolvable:$true] %s291
          %297 = dma.hbm_to_vmem [thread:$0]  %s7, 1024, %s292, [#allocation6], 64, 64, 4
        $region40: #{_fused_call.1} parent=11 // pred_fallthru
          _
        // Predicated region
        $region41: #{_fused_call.1} parent=11 // pred_check
          %p298 = pneg %p216
        $region42: #{_fused_call.1} parent=11 // pred_check_branch
          %300 = sbr.rel (%p298) target = $region44
        $region43: #{_fused_call.1} parent=11 // pred_region
          _
        $region44: #{_fused_call.1} parent=11 // pred_fallthru
          _
      $region12: #{_fused_call.1} parent=5 // pred_fallthru
        _
      %p301 = scmp.lt.s32.totalorder %s22, 2
      // Predicated region
      $region45: #{_fused_call.1} parent=5 // pred_check
        %p302 = pneg %p301
      $region46: #{_fused_call.1} parent=5 // pred_check_branch
        %304 = sbr.rel (%p302) target = $region48
      $region47: #{_fused_call.1} parent=5 // pred_region
        // Predicated region
        $region49: #{_fused_call.1} parent=47 // pred_check
          %p305 = pneg %p42
        $region50: #{_fused_call.1} parent=47 // pred_check_branch
          %307 = sbr.rel (%p305) target = $region52
        $region51: #{_fused_call.1} parent=47 // pred_region
          %s308 = sand.u32 %s32, 1
          %s309 = scalar_lea.sflag [#allocation3], %s308
          %s310 = sand.u32 %s32, 1
          %s311 = smul.addr %s310, 8
          %s312 = scalar_lea.vmem [#allocation2], %s311
          %s314 = ssub.s32 128, 128
          %315 = vsyncadd %s309, %s314
          %s316 = smul.addr %s22, 128
          %s317 = scalar_lea.hbm %s0, %s316
          %s319 = sshll.u32 %s312, 4
          %s320 = int_to_ptr.vmem [resolvable:$true] %s319
          %322 = dma.hbm_to_vmem [thread:$0]  %s317, 128, %s320, %s309
        $region52: #{_fused_call.1} parent=47 // pred_fallthru
          _
      $region48: #{_fused_call.1} parent=5 // pred_fallthru
        _
      %p323 = scmp.le.s32.totalorder 1, %s22
      %p324 = scmp.lt.s32.totalorder %s22, 3
      %p325 = pnand %p323, %p324
      %p326 = pneg %p325
      // Predicated region
      $region53: #{_fused_call.1} parent=5 // pred_check
        _
      $region54: #{_fused_call.1} parent=5 // pred_check_branch
        %328 = sbr.rel (%p325) target = $region56
      $region55: #{_fused_call.1} parent=5 // pred_region
        %s329 = ssub.s32 %s22, 1
        %s330 = sand.u32 %s35, 1
        %s331 = scalar_lea.sflag [#allocation3], %s330
        %s332 = sand.u32 %s35, 1
        %s333 = smul.addr %s332, 8
        %s334 = scalar_lea.vmem [#allocation2], %s333
        // Predicated region
        $region57: #{_fused_call.1} parent=55 // pred_check
          %p335 = pneg %p48
        $region58: #{_fused_call.1} parent=55 // pred_check_branch
          %337 = sbr.rel (%p335) target = $region60
        $region59: #{_fused_call.1} parent=55 // pred_region
          %338 = dma.done %s331, 128
        $region60: #{_fused_call.1} parent=55 // pred_fallthru
          _
        // Predicated region
        $region61: #{_fused_call.1} parent=55 // pred_check
          %p339 = pneg %p111
        $region62: #{_fused_call.1} parent=55 // pred_check_branch
          %341 = sbr.rel (%p339) target = $region64
        $region63: #{_fused_call.1} parent=55 // pred_region
          %342 = dma.done [#allocation6], 1024
        $region64: #{_fused_call.1} parent=55 // pred_fallthru
          _
        // Predicated region
        $region65: #{_fused_call.1} parent=55 // pred_check
          %p343 = pneg %p195
        $region66: #{_fused_call.1} parent=55 // pred_check_branch
          %345 = sbr.rel (%p343) target = $region68
        $region67: #{_fused_call.1} parent=55 // pred_region
          %346 = dma.done [#allocation6], 1024
        $region68: #{_fused_call.1} parent=55 // pred_fallthru
          _
        %s347 = sand.u32 %s35, 1
        %s348 = scalar_lea.sflag [#allocation3], %s347
        %s349 = sand.u32 %s35, 1
        %s350 = smul.addr %s349, 8
        %s351 = scalar_lea.vmem [#allocation2], %s350
        %p352 = pneg %p48
        %p353 = pneg %p45
        %p354 = pneg %p69
        %p355 = pneg %p66
        %p356 = pneg %p90
        %p357 = pneg %p87
        %p358 = pneg %p111
        %p359 = pneg %p108
        %p360 = pneg %p132
        %p361 = pneg %p129
        %p362 = pneg %p153
        %p363 = pneg %p150
        %p364 = pneg %p174
        %p365 = pneg %p171
        %p366 = pneg %p195
        %p367 = pneg %p192
        %p368 = pneg %p216
        %p369 = pneg %p213
        %p370 = pneg %p242
        %p371 = pneg %p239
        %s372 = sand.u32 %s229, 1
        %s373 = scalar_lea.sflag [#allocation4], %s372
        %s374 = sand.u32 %s229, 1
        %s375 = smul.addr %s374, 8
        %s376 = scalar_lea.vmem [#allocation8], %s375
        %v378 = vld [vmem:[%s334] sm:$0xff]
        %v379 = vld [vmem:[%s1] sm:$0x1]
        %v380 = vld [vmem:[%s2] sm:$0x1]
        %381 = vadd.xlane.f32.xlu0 %v378
        %v382 = vpop.xlane.xlu0 %381
        %v383 = vmul.f32 %v382, 0.03125
        %v384 = vsub.f32 %v378, %v383
        %v385 = vlaneseq
        %v386 = vand.u32 %v385, 127
        %vm387 = vcmp.lt.s32.totalorder %v386, 32
        %v388 = vsel %vm387, 1, 0
        %vm389 = vcmp.eq.s32.totalorder %v388, 1
        %v390 = vsel %vm389, %v384, 0.0
        %v391 = vmul.f32 %v390, %v390
        %392 = vadd.xlane.f32.xlu0 %v391
        %v393 = vpop.xlane.xlu0 %392
        %v394 = vmul.f32 %v393, 0.03125
        %v395 = vadd.f32 %v394, 1e-05
        %v396 = vrsqrt.pop %v395
        %v397 = vmul.f32 %v384, %v396
        %v399 = vlaneseq
        %v400 = vshrl.u32 %v399, 7
        %v401 = vsub.s32 0, %v400
        %v402 = vrot.slane %v379, %v401
        %v404 = vmul.f32 %v397, %v402
        %v406 = vlaneseq
        %v407 = vshrl.u32 %v406, 7
        %v408 = vsub.s32 0, %v407
        %v409 = vrot.slane %v380, %v408
        %v411 = vadd.f32 %v404, %v409
        %v412 = vmul.f32 %v411, 0.5
        %v413 = vmul.f32 %v411, 0.70710677
        %v414 = verf.f32.pop %v413
        %v415 = vadd.f32 %v414, 1.0
        %v416 = vmul.f32 %v412, %v415
        %v417 = vpack.c.bf16 %v416, %v416
        %v418 = vld [vmem:[#allocation5] sm:$0xf]
        %v419 = vld [vmem:[#allocation5 + $0x4] sm:$0xf]
        %v420 = vld [vmem:[#allocation5 + $0x8] sm:$0xf]
        %v421 = vld [vmem:[#allocation5 + $0xc] sm:$0xf]
        %v422 = vld [vmem:[#allocation5 + $0x10] sm:$0xf]
        %v423 = vld [vmem:[#allocation5 + $0x14] sm:$0xf]
        %v424 = vld [vmem:[#allocation5 + $0x18] sm:$0xf]
        %v425 = vld [vmem:[#allocation5 + $0x1c] sm:$0xf]
        %v426 = vld [vmem:[#allocation5 + $0x20] sm:$0xf]
        %v427 = vld [vmem:[#allocation5 + $0x24] sm:$0xf]
        %v428 = vld [vmem:[#allocation5 + $0x28] sm:$0xf]
        %v429 = vld [vmem:[#allocation5 + $0x2c] sm:$0xf]
        %v430 = vld [vmem:[#allocation5 + $0x30] sm:$0xf]
        %v431 = vld [vmem:[#allocation5 + $0x34] sm:$0xf]
        %v432 = vld [vmem:[#allocation5 + $0x38] sm:$0xf]
        %v433 = vld [vmem:[#allocation5 + $0x3c] sm:$0xf]
        %v434 = vld [vmem:[%s4] sm:$0x1]
        %v436 = vlaneseq
        %v437 = vshrl.u32 %v436, 7
        %v438 = vsub.s32 0, %v437
        %v439 = vrot.slane %v434, %v438
        %v457 = vunpack.c.l.b16 %v418
        %v458 = vunpack.c.l.b16 %v419
        %v459 = vunpack.c.l.b16 %v420
        %v460 = vunpack.c.l.b16 %v421
        %v461 = vunpack.c.l.b16 %v422
        %v462 = vunpack.c.l.b16 %v423
        %v463 = vunpack.c.l.b16 %v424
        %v464 = vunpack.c.l.b16 %v425
        %v465 = vunpack.c.l.b16 %v426
        %v466 = vunpack.c.l.b16 %v427
        %v467 = vunpack.c.l.b16 %v428
        %v468 = vunpack.c.l.b16 %v429
        %v469 = vunpack.c.l.b16 %v430
        %v470 = vunpack.c.l.b16 %v431
        %v471 = vunpack.c.l.b16 %v432
        %v472 = vunpack.c.l.b16 %v433
        %v473 = vpack.c.b16 %v458, %v457
        %v474 = vpack.c.b16 %v460, %v459
        %v475 = vpack.c.b16 %v462, %v461
        %v476 = vpack.c.b16 %v464, %v463
        %v477 = vpack.c.b16 %v466, %v465
        %v478 = vpack.c.b16 %v468, %v467
        %v479 = vpack.c.b16 %v470, %v469
        %v480 = vpack.c.b16 %v472, %v471
        %489 = vmatprep.subr.bf16.mxu0 0
        %490 = vmatpush1.bf16.msra.mxu0 %v480
        %491 = vmatprep.subr.bf16.mxu0 0
        %492 = vmatpush1.bf16.msra.mxu0 %v479
        %493 = vmatprep.subr.bf16.mxu0 0
        %494 = vmatpush1.bf16.msra.mxu0 %v478
        %495 = vmatprep.subr.bf16.mxu0 0
        %496 = vmatpush1.bf16.msra.mxu0 %v477
        %497 = vmatprep.subr.bf16.mxu0 0
        %498 = vmatpush1.bf16.msra.mxu0 %v476
        %499 = vmatprep.subr.bf16.mxu0 0
        %500 = vmatpush1.bf16.msra.mxu0 %v475
        %501 = vmatprep.subr.bf16.mxu0 0
        %502 = vmatpush1.bf16.msra.mxu0 %v474
        %503 = vmatprep.subr.bf16.mxu0 0
        %504 = vmatpush1.bf16.msra.mxu0 %v473
        %505 = vmatprep.subr.bf16.mxu0 0
        %506 = vmatpush2.bf16.msra.mxu0 0
        %507 = vmatprep.subr.bf16.mxu0 0
        %508 = vmatpush2.bf16.msra.mxu0 0
        %509 = vmatprep.subr.bf16.mxu0 0
        %510 = vmatpush2.bf16.msra.mxu0 0
        %511 = vmatprep.subr.bf16.mxu0 0
        %512 = vmatpush2.bf16.msra.mxu0 0
        %513 = vmatprep.subr.bf16.mxu0 0
        %514 = vmatpush2.bf16.msra.mxu0 0
        %515 = vmatprep.subr.bf16.mxu0 0
        %516 = vmatpush2.bf16.msra.mxu0 0
        %517 = vmatprep.subr.bf16.mxu0 0
        %518 = vmatpush2.bf16.msra.mxu0 0
        %519 = vmatprep.subr.bf16.mxu0 0
        %520 = vmatpush2.bf16.msra.mxu0 0
        %521 = vmatprep.mubr.bf16.mxu0 0
        %522 = vmatmul.mubr.bf16.gmra.mxu0 %v417
        %v523 = vpop.f32.mrf.mxu0
        %v524 = vadd.f32 %v439, %v523
        %v525 = vpop.f32.mrf.mxu0
        %v526 = vpop.f32.mrf.mxu0
        %v527 = vpop.f32.mrf.mxu0
        %528 = vdwg.mxu0
        %v529 = vld [vmem:[%s5] sm:$0x1]
        %v530 = vld [vmem:[%s6] sm:$0x1]
        %531 = vadd.xlane.f32.xlu0 %v524
        %v532 = vpop.xlane.xlu0 %531
        %v533 = vmul.f32 %v532, 0.015625
        %v534 = vsub.f32 %v524, %v533
        %vm535 = vcmp.lt.s32.totalorder %v386, 64
        %v536 = vsel %vm535, 1, 0
        %vm537 = vcmp.eq.s32.totalorder %v536, 1
        %v538 = vsel %vm537, %v534, 0.0
        %v539 = vmul.f32 %v538, %v538
        %540 = vadd.xlane.f32.xlu0 %v539
        %v541 = vpop.xlane.xlu0 %540
        %v542 = vmul.f32 %v541, 0.015625
        %v543 = vadd.f32 %v542, 1e-05
        %v544 = vrsqrt.pop %v543
        %v545 = vmul.f32 %v534, %v544
        %v547 = vlaneseq
        %v548 = vshrl.u32 %v547, 7
        %v549 = vsub.s32 0, %v548
        %v550 = vrot.slane %v529, %v549
        %v552 = vmul.f32 %v545, %v550
        %v554 = vlaneseq
        %v555 = vshrl.u32 %v554, 7
        %v556 = vsub.s32 0, %v555
        %v557 = vrot.slane %v530, %v556
        %v559 = vadd.f32 %v552, %v557
        %v560 = vmul.f32 %v559, 0.5
        %v561 = vmul.f32 %v559, 0.70710677
        %v562 = verf.f32.pop %v561
        %v563 = vadd.f32 %v562, 1.0
        %v564 = vmul.f32 %v560, %v563
        %v565 = vpack.c.bf16 %v564, %v564
        %v566 = vld [vmem:[#allocation7] sm:$0xf]
        %v567 = vld [vmem:[#allocation7 + $0x4] sm:$0xf]
        %v568 = vld [vmem:[#allocation7 + $0x8] sm:$0xf]
        %v569 = vld [vmem:[#allocation7 + $0xc] sm:$0xf]
        %v570 = vld [vmem:[#allocation7 + $0x10] sm:$0xf]
        %v571 = vld [vmem:[#allocation7 + $0x14] sm:$0xf]
        %v572 = vld [vmem:[#allocation7 + $0x18] sm:$0xf]
        %v573 = vld [vmem:[#allocation7 + $0x1c] sm:$0xf]
        %v574 = vld [vmem:[#allocation7 + $0x20] sm:$0xf]
        %v575 = vld [vmem:[#allocation7 + $0x24] sm:$0xf]
        %v576 = vld [vmem:[#allocation7 + $0x28] sm:$0xf]
        %v577 = vld [vmem:[#allocation7 + $0x2c] sm:$0xf]
        %v578 = vld [vmem:[#allocation7 + $0x30] sm:$0xf]
        %v579 = vld [vmem:[#allocation7 + $0x34] sm:$0xf]
        %v580 = vld [vmem:[#allocation7 + $0x38] sm:$0xf]
        %v581 = vld [vmem:[#allocation7 + $0x3c] sm:$0xf]
        %v582 = vld [vmem:[%s8] sm:$0x1]
        %v584 = vlaneseq
        %v585 = vshrl.u32 %v584, 7
        %v586 = vsub.s32 0, %v585
        %v587 = vrot.slane %v582, %v586
        %v605 = vunpack.c.l.b16 %v566
        %v606 = vunpack.c.l.b16 %v567
        %v607 = vunpack.c.l.b16 %v568
        %v608 = vunpack.c.l.b16 %v569
        %v609 = vunpack.c.l.b16 %v570
        %v610 = vunpack.c.l.b16 %v571
        %v611 = vunpack.c.l.b16 %v572
        %v612 = vunpack.c.l.b16 %v573
        %v613 = vunpack.c.l.b16 %v574
        %v614 = vunpack.c.l.b16 %v575
        %v615 = vunpack.c.l.b16 %v576
        %v616 = vunpack.c.l.b16 %v577
        %v617 = vunpack.c.l.b16 %v578
        %v618 = vunpack.c.l.b16 %v579
        %v619 = vunpack.c.l.b16 %v580
        %v620 = vunpack.c.l.b16 %v581
        %v621 = vpack.c.b16 %v606, %v605
        %v622 = vpack.c.b16 %v608, %v607
        %v623 = vpack.c.b16 %v610, %v609
        %v624 = vpack.c.b16 %v612, %v611
        %v625 = vpack.c.b16 %v614, %v613
        %v626 = vpack.c.b16 %v616, %v615
        %v627 = vpack.c.b16 %v618, %v617
        %v628 = vpack.c.b16 %v620, %v619
        %637 = vmatprep.subr.bf16.mxu0 0
        %638 = vmatpush1.bf16.msra.mxu0 %v628
        %639 = vmatprep.subr.bf16.mxu0 0
        %640 = vmatpush1.bf16.msra.mxu0 %v627
        %641 = vmatprep.subr.bf16.mxu0 0
        %642 = vmatpush1.bf16.msra.mxu0 %v626
        %643 = vmatprep.subr.bf16.mxu0 0
        %644 = vmatpush1.bf16.msra.mxu0 %v625
        %645 = vmatprep.subr.bf16.mxu0 0
        %646 = vmatpush1.bf16.msra.mxu0 %v624
        %647 = vmatprep.subr.bf16.mxu0 0
        %648 = vmatpush1.bf16.msra.mxu0 %v623
        %649 = vmatprep.subr.bf16.mxu0 0
        %650 = vmatpush1.bf16.msra.mxu0 %v622
        %651 = vmatprep.subr.bf16.mxu0 0
        %652 = vmatpush1.bf16.msra.mxu0 %v621
        %653 = vmatprep.subr.bf16.mxu0 0
        %654 = vmatpush2.bf16.msra.mxu0 0
        %655 = vmatprep.subr.bf16.mxu0 0
        %656 = vmatpush2.bf16.msra.mxu0 0
        %657 = vmatprep.subr.bf16.mxu0 0
        %658 = vmatpush2.bf16.msra.mxu0 0
        %659 = vmatprep.subr.bf16.mxu0 0
        %660 = vmatpush2.bf16.msra.mxu0 0
        %661 = vmatprep.subr.bf16.mxu0 0
        %662 = vmatpush2.bf16.msra.mxu0 0
        %663 = vmatprep.subr.bf16.mxu0 0
        %664 = vmatpush2.bf16.msra.mxu0 0
        %665 = vmatprep.subr.bf16.mxu0 0
        %666 = vmatpush2.bf16.msra.mxu0 0
        %667 = vmatprep.subr.bf16.mxu0 0
        %668 = vmatpush2.bf16.msra.mxu0 0
        %669 = vmatprep.mubr.bf16.mxu0 0
        %670 = vmatmul.mubr.bf16.gmra.mxu0 %v565
        %v671 = vpop.f32.mrf.mxu0
        %v672 = vadd.f32 %v587, %v671
        %v673 = vpop.f32.mrf.mxu0
        %v674 = vpop.f32.mrf.mxu0
        %v675 = vpop.f32.mrf.mxu0
        %676 = vdwg.mxu0
        %v677 = vadd.f32 %v672, %v378
        %678 = vst [vmem:[%s376] sm:$0xff] %v677
        %s679 = sand.u32 %s229, 1
        %s680 = scalar_lea.sflag [#allocation4], %s679
        %s681 = sand.u32 %s229, 1
        %s682 = smul.addr %s681, 8
        %s683 = scalar_lea.vmem [#allocation8], %s682
        // Predicated region
        $region69: #{_fused_call.1} parent=55 // pred_check
          %p684 = pneg %p239
        $region70: #{_fused_call.1} parent=55 // pred_check_branch
          %686 = sbr.rel (%p684) target = $region72
        $region71: #{_fused_call.1} parent=55 // pred_region
          %s688 = ssub.s32 128, 128
          %689 = vsyncadd %s680, %s688
          %s690 = smul.addr %s27, 128
          %s691 = scalar_lea.hbm %s9, %s690
          %s693 = sshll.u32 %s683, 4
          %s694 = int_to_ptr.vmem [resolvable:$true] %s693
          %696 = dma.vmem_to_hbm [thread:$0]  %s694, 128, %s691, %s680
        $region72: #{_fused_call.1} parent=55 // pred_fallthru
          _
      $region56: #{_fused_call.1} parent=5 // pred_fallthru
        _
      %p697 = scmp.le.s32.totalorder 2, %s22
      // Predicated region
      $region73: #{_fused_call.1} parent=5 // pred_check
        %p698 = pneg %p697
      $region74: #{_fused_call.1} parent=5 // pred_check_branch
        %700 = sbr.rel (%p698) target = $region76
      $region75: #{_fused_call.1} parent=5 // pred_region
        %s701 = ssub.s32 %s22, 2
        // Predicated region
        $region77: #{_fused_call.1} parent=75 // pred_check
          %p702 = pneg %p245
        $region78: #{_fused_call.1} parent=75 // pred_check_branch
          %704 = sbr.rel (%p702) target = $region80
        $region79: #{_fused_call.1} parent=75 // pred_region
          %s705 = sand.u32 %s230, 1
          %s706 = scalar_lea.sflag [#allocation4], %s705
          %s707 = sand.u32 %s230, 1
          %s708 = smul.addr %s707, 8
          %s709 = scalar_lea.vmem [#allocation8], %s708
          %710 = dma.done %s706, 128
        $region80: #{_fused_call.1} parent=75 // pred_fallthru
          _
      $region76: #{_fused_call.1} parent=5 // pred_fallthru
        _
    $region6: #{_fused_call.1} parent=1 // loop_footer
      %s26 = sadd.s32 1, %s22
    $region7: #{_fused_call.1} parent=1 // loop_footer_branch
      %21 = sbr.rel target = $region3
    $region8: #{_fused_call.1} parent=1 // loop_exit
      _
    %711 = vsyncpa [#allocation3], 1
    %s712 = scalar_lea.sflag [#allocation3], 1
    %713 = vsyncpa %s712, 1
    %714 = vsyncpa [#allocation6], 1
    %715 = vsyncpa [#allocation4], 1
    %s716 = scalar_lea.sflag [#allocation4], 1
    %717 = vsyncpa %s716, 1

</llo_original>
